<compile_context>
chip_gen: v7x
topology: tpu7x:2x2x1
jax: 0.10.0
libtpu: 0.0.40
codegen_flags: <defaults>
</compile_context>

<pallas_src>
import math

import jax
import jax.numpy as jnp
from jax.experimental import pallas as pl
from jax.experimental.pallas import tpu as pltpu

# ------------------------- small shapes (consistent with the module) ----------------
B, T = 2, 2                 # clips, frames per clip
BT = B * T
MID = 32                    # stand-in for EfficientNet-b0 mid_dim=1280
E = 32                      # stand-in for out_dim=1024
FH = FW = 4                 # feat_reso for resolution=128 -> (4, 4)
S = FH * FW                 # 16 spatial tokens per frame
COND = 16                   # stand-in for the 512-dim conditioning vector
H = 4                       # num_heads (CrossAttentionLayer(out_dim, 4))
DH = E // H                 # head dim = 8
MAX_LEN = 256               # LearnablePositionalEncoding max_len


def _seg_max(mat):
    """Per-sample max over each contiguous block of S rows: (BT*S, W) -> (BT, W).
    Static slices + 2D sublane reductions only (safe to lower)."""
    return jnp.concatenate(
        [jnp.max(mat[n * S:(n + 1) * S, :], axis=0, keepdims=True) for n in range(BT)],
        axis=0)


def xatten_head_kernel(feat_ref, cond_ref, poskv_ref,
                       wconv_ref, bconv_ref,
                       wcq_ref, bcq_ref,
                       wkv_ref, bkv_ref,
                       wo_ref, bo_ref,
                       wlp_ref, wlq_ref, bl_ref,
                       hsel_ref, hselt_ref, seg_ref, segt_ref,
                       out_ref):
    """Entire xatten head for all B*T samples in one gridless step.

    feat_ref: (BT*S, MID) channels-last feature tokens; cond_ref: (BT, COND).
    hsel (E,H): hsel[e,h]=1 iff e//DH==h.  seg (BT*S,BT): seg[r,n]=1 iff r//S==n.
    """
    f32 = jnp.float32

    # ---- final_layer: 1x1 conv over channels == one (BT*S, MID) @ (MID, E) matmul
    x = jnp.dot(feat_ref[...], wconv_ref[...], preferred_element_type=f32) + bconv_ref[...]

    # ---- AdaptiveMaxPool2d(1): per-sample max over the S spatial positions
    x_pool = _seg_max(x)                                                       # (BT, E)

    # ---- LearnablePositionalEncoding on the kv tokens (rows 0..S-1, pre-tiled)
    kv = x + poskv_ref[...]                                                    # (BT*S, E)

    # ---- query path: cond_layer + pos row 0 + q in-projection + 1/sqrt(DH),
    #      all folded into a single (COND, E) weight at prep time
    q = jnp.dot(cond_ref[...], wcq_ref[...], preferred_element_type=f32) + bcq_ref[...]   # (BT, E)

    # ---- fused K|V in-projection: one (E, 2E) matmul, then lane slices
    kvp = jnp.dot(kv, wkv_ref[...], preferred_element_type=f32) + bkv_ref[...]             # (BT*S, 2E)
    k = kvp[:, :E]
    v = kvp[:, E:]

    # ---- scores for all samples & heads at once:
    #      replicate q to every kv row (seg @ q), multiply with k elementwise,
    #      then sum each head's DH lanes via the 0/1 head-selector matmul
    q_rep = jnp.dot(seg_ref[...], q, preferred_element_type=f32)               # (BT*S, E)
    scores = jnp.dot(k * q_rep, hsel_ref[...], preferred_element_type=f32)     # (BT*S, H)

    # ---- per-(sample, head) softmax over the S kv positions
    stab = jnp.dot(seg_ref[...], _seg_max(scores), preferred_element_type=f32)  # (BT*S, H)
    expo = jnp.exp(scores - stab)
    denom = jnp.dot(segt_ref[...], expo, preferred_element_type=f32)            # (BT, H)
    inv = pl.reciprocal(denom, approx=True)
    p = expo * jnp.dot(seg_ref[...], inv, preferred_element_type=f32)           # (BT*S, H)

    # ---- attention context (broadcast head weights back to DH lanes, segment-sum)
    ctx = jnp.dot(segt_ref[...],
                  jnp.dot(p, hselt_ref[...], preferred_element_type=f32) * v,
                  preferred_element_type=f32)                                   # (BT, E)

    # ---- MultiheadAttention output projection
    x_query = jnp.dot(ctx, wo_ref[...], preferred_element_type=f32) + bo_ref[...]

    # ---- last_layer over concat(x_pool, x_query): weight pre-split -> no lane concat
    out_ref[...] = (jnp.dot(x_pool, wlp_ref[...], preferred_element_type=f32)
                    + jnp.dot(x_query, wlq_ref[...], preferred_element_type=f32)
                    + bl_ref[...])


def custom_efficientnet_forward(feats, cond, params):
    """feats: (B, T, MID, FH, FW) backbone feature map; cond: (B, T, COND)."""
    # channels-last token layout for the kernel: (BT*S, MID) — pure layout plumbing.
    f = feats.reshape(BT, MID, S).transpose(0, 2, 1).reshape(BT * S, MID)
    c = cond.reshape(BT, COND)

    vmem = pl.BlockSpec(memory_space=pltpu.MemorySpace.VMEM)   # whole array in VMEM
    out = pl.pallas_call(
        xatten_head_kernel,
        out_shape=jax.ShapeDtypeStruct((BT, E), jnp.float32),
        in_specs=[vmem] * 18,
        out_specs=vmem,
    )(f, c, params["pos_kv"],
      params["wconv"], params["bconv"],
      params["wcq"], params["bcq"],
      params["wkv"], params["bkv"],
      params["wo"], params["bo"],
      params["wlp"], params["wlq"], params["bl"],
      params["hsel"], params["hselT"], params["seg"], params["segT"])
    return out.reshape(B, T, E)


# ------------------------- parameters -----------------------------------------------
def init_raw_params(key):
    ks = jax.random.split(key, 16)

    def uni(k, shape, fan_in):
        s = 1.0 / math.sqrt(fan_in)
        return jax.random.uniform(k, shape, jnp.float32, -s, s)

    # all weights stored pre-transposed (y = x @ W + b), matching PyTorch x @ W.T + b
    return {
        "pos":   0.02 * jax.random.normal(ks[0], (MAX_LEN, E), jnp.float32),
        "wconv": uni(ks[1], (MID, E), MID),   "bconv": uni(ks[2], (1, E), MID),
        "wc":    uni(ks[3], (COND, E), COND), "bc":    uni(ks[4], (1, E), COND),
        "wq":    uni(ks[5], (E, E), E),  "wk": uni(ks[6], (E, E), E),
        "wv":    uni(ks[7], (E, E), E),
        "bq":    uni(ks[8], (1, E), E),  "bk": uni(ks[9], (1, E), E),
        "bv":    uni(ks[10], (1, E), E),
        "wo":    uni(ks[11], (E, E), E), "bo": uni(ks[12], (1, E), E),
        "wlast": uni(ks[13], (2 * E, E), 2 * E), "blast": uni(ks[14], (1, E), 2 * E),
    }


def prepare_kernel_params(raw):
    """Static prep-time transforms: fold 1/sqrt(DH), pos row 0 and cond_layer into the
    query projection, fuse K|V weights, build the 0/1 head-selector / segment matrices."""
    scale = 1.0 / math.sqrt(DH)
    wq_s = raw["wq"] * scale
    hsel = (jnp.arange(E)[:, None] // DH == jnp.arange(H)[None, :]).astype(jnp.float32)
    seg = (jnp.arange(BT * S)[:, None] // S == jnp.arange(BT)[None, :]).astype(jnp.float32)
    return {
        "wconv": raw["wconv"], "bconv": raw["bconv"],
        "wcq": raw["wc"] @ wq_s,
        "bcq": (raw["bc"] + raw["pos"][0][None, :]) @ wq_s + raw["bq"] * scale,
        "wkv": jnp.concatenate([raw["wk"], raw["wv"]], axis=1),
        "bkv": jnp.concatenate([raw["bk"], raw["bv"]], axis=1),
        "wo": raw["wo"], "bo": raw["bo"],
        "wlp": raw["wlast"][:E], "wlq": raw["wlast"][E:], "bl": raw["blast"],
        "pos_kv": jnp.tile(raw["pos"][:S], (BT, 1)),
        "hsel": hsel, "hselT": hsel.T, "seg": seg, "segT": seg.T,
    }


# ------------------------- pure-JAX reference (unfused, for self-check) -------------
def reference_forward(feats, cond, raw):
    x = feats.reshape(BT, MID, S).transpose(0, 2, 1)                 # (BT, S, MID)
    x = x @ raw["wconv"] + raw["bconv"]                              # final_layer (1x1 conv)
    x_pool = jnp.max(x, axis=1)                                      # AdaptiveMaxPool2d(1)
    kv = x + raw["pos"][None, :S, :]                                 # pos-enc on kv
    q_in = cond.reshape(BT, COND) @ raw["wc"] + raw["bc"] + raw["pos"][0]   # cond_layer + pos row 0
    q = q_in @ raw["wq"] + raw["bq"]
    k = kv @ raw["wk"] + raw["bk"]
    v = kv @ raw["wv"] + raw["bv"]
    qh = q.reshape(BT, H, DH)
    kh = k.reshape(BT, S, H, DH).transpose(0, 2, 1, 3)
    vh = v.reshape(BT, S, H, DH).transpose(0, 2, 1, 3)
    s = jnp.einsum("bhd,bhsd->bhs", qh, kh) / math.sqrt(DH)
    p = jax.nn.softmax(s, axis=-1)
    ctx = jnp.einsum("bhs,bhsd->bhd", p, vh).reshape(BT, E)
    x_query = ctx @ raw["wo"] + raw["bo"]
    x_cat = jnp.concatenate([x_pool, x_query], axis=-1)
    return (x_cat @ raw["wlast"] + raw["blast"]).reshape(B, T, E)


if __name__ == "__main__":
    key = jax.random.PRNGKey(0)
    k_feat, k_cond, k_param = jax.random.split(key, 3)

    feats = jax.random.normal(k_feat, (B, T, MID, FH, FW), jnp.float32)
    cond = jax.random.normal(k_cond, (B, T, COND), jnp.float32)

    raw = init_raw_params(k_param)
    params = prepare_kernel_params(raw)

    out = custom_efficientnet_forward(feats, cond, params)
    out = jax.block_until_ready(out)

    ref = reference_forward(feats, cond, raw)
    assert out.shape == (B, T, E)
    # tolerance accommodates the EUP approx-reciprocal in the softmax denominator
    assert jnp.allclose(out, ref, atol=5e-3, rtol=5e-3), "mismatch vs JAX reference"

    print("KERNEL_OK")
</pallas_src>

<mosaic_0001>
module attributes {stable_mosaic.version = 11 : i64} {
  func.func @xatten_head_kernel(%arg0: memref<64x32xf32, #tpu.memory_space<vmem>>, %arg1: memref<4x16xf32, #tpu.memory_space<vmem>>, %arg2: memref<64x32xf32, #tpu.memory_space<vmem>>, %arg3: memref<32x32xf32, #tpu.memory_space<vmem>>, %arg4: memref<1x32xf32, #tpu.memory_space<vmem>>, %arg5: memref<16x32xf32, #tpu.memory_space<vmem>>, %arg6: memref<1x32xf32, #tpu.memory_space<vmem>>, %arg7: memref<32x64xf32, #tpu.memory_space<vmem>>, %arg8: memref<1x64xf32, #tpu.memory_space<vmem>>, %arg9: memref<32x32xf32, #tpu.memory_space<vmem>>, %arg10: memref<1x32xf32, #tpu.memory_space<vmem>>, %arg11: memref<32x32xf32, #tpu.memory_space<vmem>>, %arg12: memref<32x32xf32, #tpu.memory_space<vmem>>, %arg13: memref<1x32xf32, #tpu.memory_space<vmem>>, %arg14: memref<32x4xf32, #tpu.memory_space<vmem>>, %arg15: memref<4x32xf32, #tpu.memory_space<vmem>>, %arg16: memref<64x4xf32, #tpu.memory_space<vmem>>, %arg17: memref<4x64xf32, #tpu.memory_space<vmem>>, %arg18: memref<4x32xf32, #tpu.memory_space<vmem>>) attributes {dimension_semantics = [], scalar_prefetch = 0 : i64, scratch_operands = 0 : i64, tpu.core_type = #tpu.core_type<tc>} {
    %c0 = arith.constant 0 : index
    %c0_0 = arith.constant 0 : index
    %0 = vector.load %arg0[%c0, %c0_0] : memref<64x32xf32, #tpu.memory_space<vmem>>, vector<64x32xf32>
    %c0_1 = arith.constant 0 : index
    %c0_2 = arith.constant 0 : index
    %1 = vector.load %arg3[%c0_1, %c0_2] : memref<32x32xf32, #tpu.memory_space<vmem>>, vector<32x32xf32>
    %cst = arith.constant dense<0.000000e+00> : vector<64x32xf32>
    %2 = tpu.matmul %0, %1, %cst {dimension_numbers = #tpu.dot_dimension_numbers<[1], [0], [0], [1], [0, 0, 1, 1], [], []>} : vector<64x32xf32>, vector<32x32xf32>, vector<64x32xf32> -> vector<64x32xf32>
    %c0_3 = arith.constant 0 : index
    %c0_4 = arith.constant 0 : index
    %3 = vector.load %arg4[%c0_3, %c0_4] : memref<1x32xf32, #tpu.memory_space<vmem>>, vector<1x32xf32>
    %4 = vector.broadcast %3 : vector<1x32xf32> to vector<64x32xf32>
    %5 = arith.addf %2, %4 : vector<64x32xf32>
    %6 = vector.extract_strided_slice %5 {offsets = [0, 0], sizes = [16, 32], strides = [1, 1]} : vector<64x32xf32> to vector<16x32xf32>
    %cst_5 = arith.constant dense<0xFF800000> : vector<32xf32>
    %7 = vector.multi_reduction <maximumf>, %6, %cst_5 [0] : vector<16x32xf32> to vector<32xf32>
    %8 = vector.shape_cast %7 : vector<32xf32> to vector<1x32xf32>
    %9 = vector.extract_strided_slice %5 {offsets = [16, 0], sizes = [16, 32], strides = [1, 1]} : vector<64x32xf32> to vector<16x32xf32>
    %cst_6 = arith.constant dense<0xFF800000> : vector<32xf32>
    %10 = vector.multi_reduction <maximumf>, %9, %cst_6 [0] : vector<16x32xf32> to vector<32xf32>
    %11 = vector.shape_cast %10 : vector<32xf32> to vector<1x32xf32>
    %12 = vector.extract_strided_slice %5 {offsets = [32, 0], sizes = [16, 32], strides = [1, 1]} : vector<64x32xf32> to vector<16x32xf32>
    %cst_7 = arith.constant dense<0xFF800000> : vector<32xf32>
    %13 = vector.multi_reduction <maximumf>, %12, %cst_7 [0] : vector<16x32xf32> to vector<32xf32>
    %14 = vector.shape_cast %13 : vector<32xf32> to vector<1x32xf32>
    %15 = vector.extract_strided_slice %5 {offsets = [48, 0], sizes = [16, 32], strides = [1, 1]} : vector<64x32xf32> to vector<16x32xf32>
    %cst_8 = arith.constant dense<0xFF800000> : vector<32xf32>
    %16 = vector.multi_reduction <maximumf>, %15, %cst_8 [0] : vector<16x32xf32> to vector<32xf32>
    %17 = vector.shape_cast %16 : vector<32xf32> to vector<1x32xf32>
    %18 = tpu.concatenate %8, %11, %14, %17 in 0 : vector<1x32xf32>, vector<1x32xf32>, vector<1x32xf32>, vector<1x32xf32> -> vector<4x32xf32>
    %c0_9 = arith.constant 0 : index
    %c0_10 = arith.constant 0 : index
    %19 = vector.load %arg2[%c0_9, %c0_10] : memref<64x32xf32, #tpu.memory_space<vmem>>, vector<64x32xf32>
    %20 = arith.addf %5, %19 : vector<64x32xf32>
    %c0_11 = arith.constant 0 : index
    %c0_12 = arith.constant 0 : index
    %21 = vector.load %arg1[%c0_11, %c0_12] : memref<4x16xf32, #tpu.memory_space<vmem>>, vector<4x16xf32>
    %c0_13 = arith.constant 0 : index
    %c0_14 = arith.constant 0 : index
    %22 = vector.load %arg5[%c0_13, %c0_14] : memref<16x32xf32, #tpu.memory_space<vmem>>, vector<16x32xf32>
    %cst_15 = arith.constant dense<0.000000e+00> : vector<4x32xf32>
    %23 = tpu.matmul %21, %22, %cst_15 {dimension_numbers = #tpu.dot_dimension_numbers<[1], [0], [0], [1], [0, 0, 1, 1], [], []>} : vector<4x16xf32>, vector<16x32xf32>, vector<4x32xf32> -> vector<4x32xf32>
    %c0_16 = arith.constant 0 : index
    %c0_17 = arith.constant 0 : index
    %24 = vector.load %arg6[%c0_16, %c0_17] : memref<1x32xf32, #tpu.memory_space<vmem>>, vector<1x32xf32>
    %25 = vector.broadcast %24 : vector<1x32xf32> to vector<4x32xf32>
    %26 = arith.addf %23, %25 : vector<4x32xf32>
    %c0_18 = arith.constant 0 : index
    %c0_19 = arith.constant 0 : index
    %27 = vector.load %arg7[%c0_18, %c0_19] : memref<32x64xf32, #tpu.memory_space<vmem>>, vector<32x64xf32>
    %cst_20 = arith.constant dense<0.000000e+00> : vector<64x64xf32>
    %28 = tpu.matmul %20, %27, %cst_20 {dimension_numbers = #tpu.dot_dimension_numbers<[1], [0], [0], [1], [0, 0, 1, 1], [], []>} : vector<64x32xf32>, vector<32x64xf32>, vector<64x64xf32> -> vector<64x64xf32>
    %c0_21 = arith.constant 0 : index
    %c0_22 = arith.constant 0 : index
    %29 = vector.load %arg8[%c0_21, %c0_22] : memref<1x64xf32, #tpu.memory_space<vmem>>, vector<1x64xf32>
    %30 = vector.broadcast %29 : vector<1x64xf32> to vector<64x64xf32>
    %31 = arith.addf %28, %30 : vector<64x64xf32>
    %32 = vector.extract_strided_slice %31 {offsets = [0, 0], sizes = [64, 32], strides = [1, 1]} : vector<64x64xf32> to vector<64x32xf32>
    %33 = vector.extract_strided_slice %31 {offsets = [0, 32], sizes = [64, 32], strides = [1, 1]} : vector<64x64xf32> to vector<64x32xf32>
    %c0_23 = arith.constant 0 : index
    %c0_24 = arith.constant 0 : index
    %34 = vector.load %arg16[%c0_23, %c0_24] : memref<64x4xf32, #tpu.memory_space<vmem>>, vector<64x4xf32>
    %cst_25 = arith.constant dense<0.000000e+00> : vector<64x32xf32>
    %35 = tpu.matmul %34, %26, %cst_25 {dimension_numbers = #tpu.dot_dimension_numbers<[1], [0], [0], [1], [0, 0, 1, 1], [], []>} : vector<64x4xf32>, vector<4x32xf32>, vector<64x32xf32> -> vector<64x32xf32>
    %36 = arith.mulf %32, %35 : vector<64x32xf32>
    %c0_26 = arith.constant 0 : index
    %c0_27 = arith.constant 0 : index
    %37 = vector.load %arg14[%c0_26, %c0_27] : memref<32x4xf32, #tpu.memory_space<vmem>>, vector<32x4xf32>
    %cst_28 = arith.constant dense<0.000000e+00> : vector<64x4xf32>
    %38 = tpu.matmul %36, %37, %cst_28 {dimension_numbers = #tpu.dot_dimension_numbers<[1], [0], [0], [1], [0, 0, 1, 1], [], []>} : vector<64x32xf32>, vector<32x4xf32>, vector<64x4xf32> -> vector<64x4xf32>
    %c0_29 = arith.constant 0 : index
    %c0_30 = arith.constant 0 : index
    %39 = vector.load %arg16[%c0_29, %c0_30] : memref<64x4xf32, #tpu.memory_space<vmem>>, vector<64x4xf32>
    %40 = vector.extract_strided_slice %38 {offsets = [0, 0], sizes = [16, 4], strides = [1, 1]} : vector<64x4xf32> to vector<16x4xf32>
    %cst_31 = arith.constant dense<0xFF800000> : vector<4xf32>
    %41 = vector.multi_reduction <maximumf>, %40, %cst_31 [0] : vector<16x4xf32> to vector<4xf32>
    %42 = vector.shape_cast %41 : vector<4xf32> to vector<1x4xf32>
    %43 = vector.extract_strided_slice %38 {offsets = [16, 0], sizes = [16, 4], strides = [1, 1]} : vector<64x4xf32> to vector<16x4xf32>
    %cst_32 = arith.constant dense<0xFF800000> : vector<4xf32>
    %44 = vector.multi_reduction <maximumf>, %43, %cst_32 [0] : vector<16x4xf32> to vector<4xf32>
    %45 = vector.shape_cast %44 : vector<4xf32> to vector<1x4xf32>
    %46 = vector.extract_strided_slice %38 {offsets = [32, 0], sizes = [16, 4], strides = [1, 1]} : vector<64x4xf32> to vector<16x4xf32>
    %cst_33 = arith.constant dense<0xFF800000> : vector<4xf32>
    %47 = vector.multi_reduction <maximumf>, %46, %cst_33 [0] : vector<16x4xf32> to vector<4xf32>
    %48 = vector.shape_cast %47 : vector<4xf32> to vector<1x4xf32>
    %49 = vector.extract_strided_slice %38 {offsets = [48, 0], sizes = [16, 4], strides = [1, 1]} : vector<64x4xf32> to vector<16x4xf32>
    %cst_34 = arith.constant dense<0xFF800000> : vector<4xf32>
    %50 = vector.multi_reduction <maximumf>, %49, %cst_34 [0] : vector<16x4xf32> to vector<4xf32>
    %51 = vector.shape_cast %50 : vector<4xf32> to vector<1x4xf32>
    %52 = tpu.concatenate %42, %45, %48, %51 in 0 : vector<1x4xf32>, vector<1x4xf32>, vector<1x4xf32>, vector<1x4xf32> -> vector<4x4xf32>
    %cst_35 = arith.constant dense<0.000000e+00> : vector<64x4xf32>
    %53 = tpu.matmul %39, %52, %cst_35 {dimension_numbers = #tpu.dot_dimension_numbers<[1], [0], [0], [1], [0, 0, 1, 1], [], []>} : vector<64x4xf32>, vector<4x4xf32>, vector<64x4xf32> -> vector<64x4xf32>
    %54 = arith.subf %38, %53 : vector<64x4xf32>
    %55 = math.exp %54 : vector<64x4xf32>
    %c0_36 = arith.constant 0 : index
    %c0_37 = arith.constant 0 : index
    %56 = vector.load %arg17[%c0_36, %c0_37] : memref<4x64xf32, #tpu.memory_space<vmem>>, vector<4x64xf32>
    %cst_38 = arith.constant dense<0.000000e+00> : vector<4x4xf32>
    %57 = tpu.matmul %56, %55, %cst_38 {dimension_numbers = #tpu.dot_dimension_numbers<[1], [0], [0], [1], [0, 0, 1, 1], [], []>} : vector<4x64xf32>, vector<64x4xf32>, vector<4x4xf32> -> vector<4x4xf32>
    %58 = tpu.reciprocal %57 {approx = true} : vector<4x4xf32> -> vector<4x4xf32>
    %c0_39 = arith.constant 0 : index
    %c0_40 = arith.constant 0 : index
    %59 = vector.load %arg16[%c0_39, %c0_40] : memref<64x4xf32, #tpu.memory_space<vmem>>, vector<64x4xf32>
    %cst_41 = arith.constant dense<0.000000e+00> : vector<64x4xf32>
    %60 = tpu.matmul %59, %58, %cst_41 {dimension_numbers = #tpu.dot_dimension_numbers<[1], [0], [0], [1], [0, 0, 1, 1], [], []>} : vector<64x4xf32>, vector<4x4xf32>, vector<64x4xf32> -> vector<64x4xf32>
    %61 = arith.mulf %55, %60 : vector<64x4xf32>
    %c0_42 = arith.constant 0 : index
    %c0_43 = arith.constant 0 : index
    %62 = vector.load %arg17[%c0_42, %c0_43] : memref<4x64xf32, #tpu.memory_space<vmem>>, vector<4x64xf32>
    %c0_44 = arith.constant 0 : index
    %c0_45 = arith.constant 0 : index
    %63 = vector.load %arg15[%c0_44, %c0_45] : memref<4x32xf32, #tpu.memory_space<vmem>>, vector<4x32xf32>
    %cst_46 = arith.constant dense<0.000000e+00> : vector<64x32xf32>
    %64 = tpu.matmul %61, %63, %cst_46 {dimension_numbers = #tpu.dot_dimension_numbers<[1], [0], [0], [1], [0, 0, 1, 1], [], []>} : vector<64x4xf32>, vector<4x32xf32>, vector<64x32xf32> -> vector<64x32xf32>
    %65 = arith.mulf %64, %33 : vector<64x32xf32>
    %cst_47 = arith.constant dense<0.000000e+00> : vector<4x32xf32>
    %66 = tpu.matmul %62, %65, %cst_47 {dimension_numbers = #tpu.dot_dimension_numbers<[1], [0], [0], [1], [0, 0, 1, 1], [], []>} : vector<4x64xf32>, vector<64x32xf32>, vector<4x32xf32> -> vector<4x32xf32>
    %c0_48 = arith.constant 0 : index
    %c0_49 = arith.constant 0 : index
    %67 = vector.load %arg9[%c0_48, %c0_49] : memref<32x32xf32, #tpu.memory_space<vmem>>, vector<32x32xf32>
    %cst_50 = arith.constant dense<0.000000e+00> : vector<4x32xf32>
    %68 = tpu.matmul %66, %67, %cst_50 {dimension_numbers = #tpu.dot_dimension_numbers<[1], [0], [0], [1], [0, 0, 1, 1], [], []>} : vector<4x32xf32>, vector<32x32xf32>, vector<4x32xf32> -> vector<4x32xf32>
    %c0_51 = arith.constant 0 : index
    %c0_52 = arith.constant 0 : index
    %69 = vector.load %arg10[%c0_51, %c0_52] : memref<1x32xf32, #tpu.memory_space<vmem>>, vector<1x32xf32>
    %70 = vector.broadcast %69 : vector<1x32xf32> to vector<4x32xf32>
    %71 = arith.addf %68, %70 : vector<4x32xf32>
    %c0_53 = arith.constant 0 : index
    %c0_54 = arith.constant 0 : index
    %72 = vector.load %arg11[%c0_53, %c0_54] : memref<32x32xf32, #tpu.memory_space<vmem>>, vector<32x32xf32>
    %cst_55 = arith.constant dense<0.000000e+00> : vector<4x32xf32>
    %73 = tpu.matmul %18, %72, %cst_55 {dimension_numbers = #tpu.dot_dimension_numbers<[1], [0], [0], [1], [0, 0, 1, 1], [], []>} : vector<4x32xf32>, vector<32x32xf32>, vector<4x32xf32> -> vector<4x32xf32>
    %c0_56 = arith.constant 0 : index
    %c0_57 = arith.constant 0 : index
    %74 = vector.load %arg12[%c0_56, %c0_57] : memref<32x32xf32, #tpu.memory_space<vmem>>, vector<32x32xf32>
    %cst_58 = arith.constant dense<0.000000e+00> : vector<4x32xf32>
    %75 = tpu.matmul %71, %74, %cst_58 {dimension_numbers = #tpu.dot_dimension_numbers<[1], [0], [0], [1], [0, 0, 1, 1], [], []>} : vector<4x32xf32>, vector<32x32xf32>, vector<4x32xf32> -> vector<4x32xf32>
    %76 = arith.addf %73, %75 : vector<4x32xf32>
    %c0_59 = arith.constant 0 : index
    %c0_60 = arith.constant 0 : index
    %77 = vector.load %arg13[%c0_59, %c0_60] : memref<1x32xf32, #tpu.memory_space<vmem>>, vector<1x32xf32>
    %78 = vector.broadcast %77 : vector<1x32xf32> to vector<4x32xf32>
    %79 = arith.addf %76, %78 : vector<4x32xf32>
    %c0_61 = arith.constant 0 : index
    %c0_62 = arith.constant 0 : index
    %80 = vector.load %arg18[%c0_61, %c0_62] : memref<4x32xf32, #tpu.memory_space<vmem>>, vector<4x32xf32>
    tpu.vector_store %arg18[%c0_61, %c0_62], %79 {strides = array<i32>} : memref<4x32xf32, #tpu.memory_space<vmem>>, vector<4x32xf32>,
    return
  }
}

</mosaic_0001>

<llo_original>
// kernel: tpu_custom_call.1
$region0: #{tpu_custom_call.1}
  #allocation0 [shape = 'u32[]', space=smem, size = 0x4, offset = 0x4, fixed_abs, tag = 'smem constant byte address 0x4 - core index']
  #allocation1 [shape = 'u32[144,128]{1,0:T(1,128)}', space=vmem, size = 0x12000, scoped, tag = 'internal scratch']
  %s0 = inlined_call_operand.vmem [shape: f32[64,32], index: 0, kind: input, shape index: {}]
  %s1 = inlined_call_operand.vmem [shape: f32[4,16], index: 1, kind: input, shape index: {}]
  %s2 = inlined_call_operand.vmem [shape: f32[64,32], index: 2, kind: input, shape index: {}]
  %s3 = inlined_call_operand.vmem [shape: f32[32,32], index: 3, kind: input, shape index: {}]
  %s4 = inlined_call_operand.vmem [shape: f32[1,32], index: 4, kind: input, shape index: {}]
  %s5 = inlined_call_operand.vmem [shape: f32[16,32], index: 5, kind: input, shape index: {}]
  %s6 = inlined_call_operand.vmem [shape: f32[1,32], index: 6, kind: input, shape index: {}]
  %s7 = inlined_call_operand.vmem [shape: f32[32,64], index: 7, kind: input, shape index: {}]
  %s8 = inlined_call_operand.vmem [shape: f32[1,64], index: 8, kind: input, shape index: {}]
  %s9 = inlined_call_operand.vmem [shape: f32[32,32], index: 9, kind: input, shape index: {}]
  %s10 = inlined_call_operand.vmem [shape: f32[1,32], index: 10, kind: input, shape index: {}]
  %s11 = inlined_call_operand.vmem [shape: f32[32,32], index: 11, kind: input, shape index: {}]
  %s12 = inlined_call_operand.vmem [shape: f32[32,32], index: 12, kind: input, shape index: {}]
  %s13 = inlined_call_operand.vmem [shape: f32[1,32], index: 13, kind: input, shape index: {}]
  %s14 = inlined_call_operand.vmem [shape: f32[32,4], index: 14, kind: input, shape index: {}]
  %s15 = inlined_call_operand.vmem [shape: f32[4,32], index: 15, kind: input, shape index: {}]
  %s16 = inlined_call_operand.vmem [shape: f32[64,4], index: 16, kind: input, shape index: {}]
  %s17 = inlined_call_operand.vmem [shape: f32[4,64], index: 17, kind: input, shape index: {}]
  %s18 = inlined_call_operand.hbm [shape: f32[4,32], index: 18, kind: output, shape index: {}]
  %s19 = sld [smem:[#allocation0]]
  $region82: #{tpu_custom_call.1} parent=0
    _
  %s21 = ssub.s32 1, %s19
  %s22 = scalar_select 0, %s21, %s19
  $region1: #{tpu_custom_call.1} parent=0
    #allocation2 [shape = 'u8[2048]{0}', space=vmem, size = 0x800, scoped, tag = 'output window, operand 0, single buffered']
    #allocation3 [shape = 's32[1]{0}', space=sflag, size = 0x4, scoped, tag = 'scoped memory for tpu_custom_call.1']
    %23 = vsyncpa [#allocation3], 0
    // Predicated region
    $region2: #{tpu_custom_call.1} parent=1 // pred_check
      _
    $region3: #{tpu_custom_call.1} parent=1 // pred_check_branch
      %25 = sbr.rel (0) target = $region5
    $region4: #{tpu_custom_call.1} parent=1 // pred_region
      _
    $region5: #{tpu_custom_call.1} parent=1 // pred_fallthru
      _
    // Predicated region
    $region6: #{tpu_custom_call.1} parent=1 // pred_check
      _
    $region7: #{tpu_custom_call.1} parent=1 // pred_check_branch
      %27 = sbr.rel (0) target = $region9
    $region8: #{tpu_custom_call.1} parent=1 // pred_region
      _
    $region9: #{tpu_custom_call.1} parent=1 // pred_fallthru
      _
    // Predicated region
    $region10: #{tpu_custom_call.1} parent=1 // pred_check
      _
    $region11: #{tpu_custom_call.1} parent=1 // pred_check_branch
      %29 = sbr.rel (0) target = $region13
    $region12: #{tpu_custom_call.1} parent=1 // pred_region
      _
    $region13: #{tpu_custom_call.1} parent=1 // pred_fallthru
      _
    // Predicated region
    $region14: #{tpu_custom_call.1} parent=1 // pred_check
      _
    $region15: #{tpu_custom_call.1} parent=1 // pred_check_branch
      %31 = sbr.rel (0) target = $region17
    $region16: #{tpu_custom_call.1} parent=1 // pred_region
      _
    $region17: #{tpu_custom_call.1} parent=1 // pred_fallthru
      _
    // Predicated region
    $region18: #{tpu_custom_call.1} parent=1 // pred_check
      _
    $region19: #{tpu_custom_call.1} parent=1 // pred_check_branch
      %33 = sbr.rel (0) target = $region21
    $region20: #{tpu_custom_call.1} parent=1 // pred_region
      _
    $region21: #{tpu_custom_call.1} parent=1 // pred_fallthru
      _
    // Predicated region
    $region22: #{tpu_custom_call.1} parent=1 // pred_check
      _
    $region23: #{tpu_custom_call.1} parent=1 // pred_check_branch
      %35 = sbr.rel (0) target = $region25
    $region24: #{tpu_custom_call.1} parent=1 // pred_region
      _
    $region25: #{tpu_custom_call.1} parent=1 // pred_fallthru
      _
    // Predicated region
    $region26: #{tpu_custom_call.1} parent=1 // pred_check
      _
    $region27: #{tpu_custom_call.1} parent=1 // pred_check_branch
      %37 = sbr.rel (0) target = $region29
    $region28: #{tpu_custom_call.1} parent=1 // pred_region
      _
    $region29: #{tpu_custom_call.1} parent=1 // pred_fallthru
      _
    // Predicated region
    $region30: #{tpu_custom_call.1} parent=1 // pred_check
      _
    $region31: #{tpu_custom_call.1} parent=1 // pred_check_branch
      %39 = sbr.rel (0) target = $region33
    $region32: #{tpu_custom_call.1} parent=1 // pred_region
      _
    $region33: #{tpu_custom_call.1} parent=1 // pred_fallthru
      _
    // Predicated region
    $region34: #{tpu_custom_call.1} parent=1 // pred_check
      _
    $region35: #{tpu_custom_call.1} parent=1 // pred_check_branch
      %41 = sbr.rel (0) target = $region37
    $region36: #{tpu_custom_call.1} parent=1 // pred_region
      _
    $region37: #{tpu_custom_call.1} parent=1 // pred_fallthru
      _
    // Predicated region
    $region38: #{tpu_custom_call.1} parent=1 // pred_check
      _
    $region39: #{tpu_custom_call.1} parent=1 // pred_check_branch
      %43 = sbr.rel (0) target = $region41
    $region40: #{tpu_custom_call.1} parent=1 // pred_region
      _
    $region41: #{tpu_custom_call.1} parent=1 // pred_fallthru
      _
    // Predicated region
    $region42: #{tpu_custom_call.1} parent=1 // pred_check
      _
    $region43: #{tpu_custom_call.1} parent=1 // pred_check_branch
      %45 = sbr.rel (0) target = $region45
    $region44: #{tpu_custom_call.1} parent=1 // pred_region
      _
    $region45: #{tpu_custom_call.1} parent=1 // pred_fallthru
      _
    // Predicated region
    $region46: #{tpu_custom_call.1} parent=1 // pred_check
      _
    $region47: #{tpu_custom_call.1} parent=1 // pred_check_branch
      %47 = sbr.rel (0) target = $region49
    $region48: #{tpu_custom_call.1} parent=1 // pred_region
      _
    $region49: #{tpu_custom_call.1} parent=1 // pred_fallthru
      _
    // Predicated region
    $region50: #{tpu_custom_call.1} parent=1 // pred_check
      _
    $region51: #{tpu_custom_call.1} parent=1 // pred_check_branch
      %49 = sbr.rel (0) target = $region53
    $region52: #{tpu_custom_call.1} parent=1 // pred_region
      _
    $region53: #{tpu_custom_call.1} parent=1 // pred_fallthru
      _
    // Predicated region
    $region54: #{tpu_custom_call.1} parent=1 // pred_check
      _
    $region55: #{tpu_custom_call.1} parent=1 // pred_check_branch
      %51 = sbr.rel (0) target = $region57
    $region56: #{tpu_custom_call.1} parent=1 // pred_region
      _
    $region57: #{tpu_custom_call.1} parent=1 // pred_fallthru
      _
    // Predicated region
    $region58: #{tpu_custom_call.1} parent=1 // pred_check
      _
    $region59: #{tpu_custom_call.1} parent=1 // pred_check_branch
      %53 = sbr.rel (0) target = $region61
    $region60: #{tpu_custom_call.1} parent=1 // pred_region
      _
    $region61: #{tpu_custom_call.1} parent=1 // pred_fallthru
      _
    // Predicated region
    $region62: #{tpu_custom_call.1} parent=1 // pred_check
      _
    $region63: #{tpu_custom_call.1} parent=1 // pred_check_branch
      %55 = sbr.rel (0) target = $region65
    $region64: #{tpu_custom_call.1} parent=1 // pred_region
      _
    $region65: #{tpu_custom_call.1} parent=1 // pred_fallthru
      _
    // Predicated region
    $region66: #{tpu_custom_call.1} parent=1 // pred_check
      _
    $region67: #{tpu_custom_call.1} parent=1 // pred_check_branch
      %57 = sbr.rel (0) target = $region69
    $region68: #{tpu_custom_call.1} parent=1 // pred_region
      _
    $region69: #{tpu_custom_call.1} parent=1 // pred_fallthru
      _
    // Predicated region
    $region70: #{tpu_custom_call.1} parent=1 // pred_check
      _
    $region71: #{tpu_custom_call.1} parent=1 // pred_check_branch
      %59 = sbr.rel (0) target = $region73
    $region72: #{tpu_custom_call.1} parent=1 // pred_region
      _
    $region73: #{tpu_custom_call.1} parent=1 // pred_fallthru
      _
    %v60 = vld [vmem:[%s0] sm:$0xff]
    %v61 = vld [vmem:[%s0 + $0x8] sm:$0xff]
    %v62 = vld [vmem:[%s0 + $0x10] sm:$0xff]
    %v63 = vld [vmem:[%s0 + $0x18] sm:$0xff]
    %v64 = vld [vmem:[%s0 + $0x20] sm:$0xff]
    %v65 = vld [vmem:[%s0 + $0x28] sm:$0xff]
    %v66 = vld [vmem:[%s0 + $0x30] sm:$0xff]
    %v67 = vld [vmem:[%s0 + $0x38] sm:$0xff]
    %v68 = vld [vmem:[%s3] sm:$0xff]
    %v69 = vld [vmem:[%s3 + $0x8] sm:$0xff]
    %v70 = vld [vmem:[%s3 + $0x10] sm:$0xff]
    %v71 = vld [vmem:[%s3 + $0x18] sm:$0xff]
    %v72 = vld [vmem:[%s4] sm:$0x1]
    %v74 = vlaneseq
    %v75 = vshrl.u32 %v74, 7
    %v76 = vsub.s32 0, %v75
    %v77 = vrot.slane %v72, %v76
    %vm79 = vcmask 261120
    %v81 = vsel %vm79, %v60, 0
    %v84 = vsel %vm79, %v61, 0
    %v87 = vsel %vm79, %v62, 0
    %v90 = vsel %vm79, %v63, 0
    %v93 = vsel %vm79, %v64, 0
    %v96 = vsel %vm79, %v65, 0
    %v99 = vsel %vm79, %v66, 0
    %v102 = vsel %vm79, %v67, 0
    %104 = vmatprep.subr.mxu0 0.0
    %105 = vmatpush1.msra.mxu0 %v68
    %106 = vmatprep.subr.mxu0 0.0
    %107 = vmatpush1.msra.mxu0 %v69
    %108 = vmatprep.subr.mxu0 0.0
    %109 = vmatpush1.msra.mxu0 %v70
    %110 = vmatprep.subr.mxu0 0.0
    %111 = vmatpush1.msra.mxu0 %v71
    %112 = vmatprep.subr.mxu0 0.0
    %113 = vmatpush1.msra.mxu0 0.0
    %114 = vmatprep.subr.mxu0 0.0
    %115 = vmatpush1.msra.mxu0 0.0
    %116 = vmatprep.subr.mxu0 0.0
    %117 = vmatpush1.msra.mxu0 0.0
    %118 = vmatprep.subr.mxu0 0.0
    %119 = vmatpush1.msra.mxu0 0.0
    %120 = vmatprep.subr.mxu0 0.0
    %121 = vmatpush1.msra.mxu0 0.0
    %122 = vmatprep.subr.mxu0 0.0
    %123 = vmatpush1.msra.mxu0 0.0
    %124 = vmatprep.subr.mxu0 0.0
    %125 = vmatpush1.msra.mxu0 0.0
    %126 = vmatprep.subr.mxu0 0.0
    %127 = vmatpush1.msra.mxu0 0.0
    %128 = vmatprep.subr.mxu0 0.0
    %129 = vmatpush1.msra.mxu0 0.0
    %130 = vmatprep.subr.mxu0 0.0
    %131 = vmatpush1.msra.mxu0 0.0
    %132 = vmatprep.subr.mxu0 0.0
    %133 = vmatpush1.msra.mxu0 0.0
    %134 = vmatprep.subr.mxu0 0.0
    %135 = vmatpush1.msra.mxu0 0.0
    %136 = vmatprep.subr.mxu0 0.0
    %137 = vmatpush1.msra.mxu0 0.0
    %138 = vmatprep.subr.mxu0 0.0
    %139 = vmatpush1.msra.mxu0 0.0
    %140 = vmatprep.subr.mxu0 0.0
    %141 = vmatpush1.msra.mxu0 0.0
    %142 = vmatprep.subr.mxu0 0.0
    %143 = vmatpush1.msra.mxu0 0.0
    %144 = vmatprep.subr.mxu0 0.0
    %145 = vmatpush1.msra.mxu0 0.0
    %146 = vmatprep.subr.mxu0 0.0
    %147 = vmatpush1.msra.mxu0 0.0
    %148 = vmatprep.subr.mxu0 0.0
    %149 = vmatpush1.msra.mxu0 0.0
    %150 = vmatprep.subr.mxu0 0.0
    %151 = vmatpush1.msra.mxu0 0.0
    %152 = vmatprep.subr.mxu0 0.0
    %153 = vmatpush1.msra.mxu0 0.0
    %154 = vmatprep.subr.mxu0 0.0
    %155 = vmatpush1.msra.mxu0 0.0
    %156 = vmatprep.subr.mxu0 0.0
    %157 = vmatpush1.msra.mxu0 0.0
    %158 = vmatprep.subr.mxu0 0.0
    %159 = vmatpush1.msra.mxu0 0.0
    %160 = vmatprep.subr.mxu0 0.0
    %161 = vmatpush1.msra.mxu0 0.0
    %162 = vmatprep.subr.mxu0 0.0
    %163 = vmatpush1.msra.mxu0 0.0
    %164 = vmatprep.subr.mxu0 0.0
    %165 = vmatpush1.msra.mxu0 0.0
    %166 = vmatprep.subr.mxu0 0.0
    %167 = vmatpush1.msra.mxu0 0.0
    %168 = vmatprep.mubr.f32.mxu0 0.0
    %169 = vmatmul.mubr.f32.gmra.mrb[0].mxu0 %v81
    %v170 = vpop.f32.mrb[0].mxu0
    %v171 = vadd.f32 %v77, %v170
    %v172 = vpop.f32.mrb[0].mxu0
    %173 = vmatprep.mubr.f32.mxu0 0.0
    %174 = vmatmul.mubr.f32.gmra.mrb[0].mxu0 %v84
    %v175 = vpop.f32.mrb[0].mxu0
    %v176 = vadd.f32 %v77, %v175
    %v177 = vpop.f32.mrb[0].mxu0
    %178 = vmatprep.mubr.f32.mxu0 0.0
    %179 = vmatmul.mubr.f32.gmra.mrb[0].mxu0 %v87
    %v180 = vpop.f32.mrb[0].mxu0
    %v181 = vadd.f32 %v77, %v180
    %v182 = vpop.f32.mrb[0].mxu0
    %183 = vmatprep.mubr.f32.mxu0 0.0
    %184 = vmatmul.mubr.f32.gmra.mrb[0].mxu0 %v90
    %v185 = vpop.f32.mrb[0].mxu0
    %v186 = vadd.f32 %v77, %v185
    %v187 = vpop.f32.mrb[0].mxu0
    %188 = vmatprep.mubr.f32.mxu0 0.0
    %189 = vmatmul.mubr.f32.gmra.mrb[0].mxu0 %v93
    %v190 = vpop.f32.mrb[0].mxu0
    %v191 = vadd.f32 %v77, %v190
    %v192 = vpop.f32.mrb[0].mxu0
    %193 = vmatprep.mubr.f32.mxu0 0.0
    %194 = vmatmul.mubr.f32.gmra.mrb[0].mxu0 %v96
    %v195 = vpop.f32.mrb[0].mxu0
    %v196 = vadd.f32 %v77, %v195
    %v197 = vpop.f32.mrb[0].mxu0
    %198 = vmatprep.mubr.f32.mxu0 0.0
    %199 = vmatmul.mubr.f32.gmra.mrb[0].mxu0 %v99
    %v200 = vpop.f32.mrb[0].mxu0
    %v201 = vadd.f32 %v77, %v200
    %v202 = vpop.f32.mrb[0].mxu0
    %203 = vmatprep.mubr.f32.mxu0 0.0
    %204 = vmatmul.mubr.f32.gmra.mrb[0].mxu0 %v102
    %v205 = vpop.f32.mrb[0].mxu0
    %v206 = vadd.f32 %v77, %v205
    %v207 = vpop.f32.mrb[0].mxu0
    %208 = vdwg.mxu0
    %v209 = vsel %vm79, %v171, -inf
    %v210 = vsel %vm79, %v176, -inf
    %v211 = vmax.f32 %v209, %v210
    %v212 = vrot.slane %v211, 4
    %v213 = vmax.f32 %v211, %v212
    %v214 = vrot.slane %v213, 2
    %v215 = vmax.f32 %v213, %v214
    %v216 = vrot.slane %v215, 1
    %v217 = vmax.f32 %v215, %v216
    %v218 = vsel %vm79, %v181, -inf
    %v219 = vsel %vm79, %v186, -inf
    %v220 = vmax.f32 %v218, %v219
    %v221 = vrot.slane %v220, 4
    %v222 = vmax.f32 %v220, %v221
    %v223 = vrot.slane %v222, 2
    %v224 = vmax.f32 %v222, %v223
    %v225 = vrot.slane %v224, 1
    %v226 = vmax.f32 %v224, %v225
    %v227 = vsel %vm79, %v191, -inf
    %v228 = vsel %vm79, %v196, -inf
    %v229 = vmax.f32 %v227, %v228
    %v230 = vrot.slane %v229, 4
    %v231 = vmax.f32 %v229, %v230
    %v232 = vrot.slane %v231, 2
    %v233 = vmax.f32 %v231, %v232
    %v234 = vrot.slane %v233, 1
    %v235 = vmax.f32 %v233, %v234
    %v236 = vsel %vm79, %v201, -inf
    %v237 = vsel %vm79, %v206, -inf
    %v238 = vmax.f32 %v236, %v237
    %v239 = vrot.slane %v238, 4
    %v240 = vmax.f32 %v238, %v239
    %v241 = vrot.slane %v240, 2
    %v242 = vmax.f32 %v240, %v241
    %v243 = vrot.slane %v242, 1
    %v244 = vmax.f32 %v242, %v243
    %vm245 = vcmask 1040384
    %v246 = vsel %vm245, %v217, %v226
    %vm247 = vcmask 1041408
    %v248 = vsel %vm247, %v246, %v235
    %vm249 = vcmask 1042432
    %v250 = vsel %vm249, %v248, %v244
    %v251 = vld [vmem:[%s2] sm:$0xff]
    %v252 = vld [vmem:[%s2 + $0x8] sm:$0xff]
    %v253 = vld [vmem:[%s2 + $0x10] sm:$0xff]
    %v254 = vld [vmem:[%s2 + $0x18] sm:$0xff]
    %v255 = vld [vmem:[%s2 + $0x20] sm:$0xff]
    %v256 = vld [vmem:[%s2 + $0x28] sm:$0xff]
    %v257 = vld [vmem:[%s2 + $0x30] sm:$0xff]
    %v258 = vld [vmem:[%s2 + $0x38] sm:$0xff]
    %v259 = vadd.f32 %v171, %v251
    %v260 = vadd.f32 %v176, %v252
    %v261 = vadd.f32 %v181, %v253
    %v262 = vadd.f32 %v186, %v254
    %v263 = vadd.f32 %v191, %v255
    %v264 = vadd.f32 %v196, %v256
    %v265 = vadd.f32 %v201, %v257
    %v266 = vadd.f32 %v206, %v258
    %v267 = vld [vmem:[%s1] sm:$0xf]
    %v268 = vld [vmem:[%s5] sm:$0xff]
    %v269 = vld [vmem:[%s5 + $0x8] sm:$0xff]
    %v270 = vld [vmem:[%s6] sm:$0x1]
    %v272 = vlaneseq
    %v273 = vshrl.u32 %v272, 7
    %v274 = vsub.s32 0, %v273
    %v275 = vrot.slane %v270, %v274
    %vm277 = vcmask 130048
    %v279 = vsel %vm277, %v267, 0
    %281 = vmatprep.subr.mxu0 0.0
    %282 = vmatpush1.msra.mxu0 %v268
    %283 = vmatprep.subr.mxu0 0.0
    %284 = vmatpush1.msra.mxu0 %v269
    %285 = vmatprep.subr.mxu0 0.0
    %286 = vmatpush1.msra.mxu0 0.0
    %287 = vmatprep.subr.mxu0 0.0
    %288 = vmatpush1.msra.mxu0 0.0
    %289 = vmatprep.subr.mxu0 0.0
    %290 = vmatpush1.msra.mxu0 0.0
    %291 = vmatprep.subr.mxu0 0.0
    %292 = vmatpush1.msra.mxu0 0.0
    %293 = vmatprep.subr.mxu0 0.0
    %294 = vmatpush1.msra.mxu0 0.0
    %295 = vmatprep.subr.mxu0 0.0
    %296 = vmatpush1.msra.mxu0 0.0
    %297 = vmatprep.subr.mxu0 0.0
    %298 = vmatpush1.msra.mxu0 0.0
    %299 = vmatprep.subr.mxu0 0.0
    %300 = vmatpush1.msra.mxu0 0.0
    %301 = vmatprep.subr.mxu0 0.0
    %302 = vmatpush1.msra.mxu0 0.0
    %303 = vmatprep.subr.mxu0 0.0
    %304 = vmatpush1.msra.mxu0 0.0
    %305 = vmatprep.subr.mxu0 0.0
    %306 = vmatpush1.msra.mxu0 0.0
    %307 = vmatprep.subr.mxu0 0.0
    %308 = vmatpush1.msra.mxu0 0.0
    %309 = vmatprep.subr.mxu0 0.0
    %310 = vmatpush1.msra.mxu0 0.0
    %311 = vmatprep.subr.mxu0 0.0
    %312 = vmatpush1.msra.mxu0 0.0
    %313 = vmatprep.subr.mxu0 0.0
    %314 = vmatpush1.msra.mxu0 0.0
    %315 = vmatprep.subr.mxu0 0.0
    %316 = vmatpush1.msra.mxu0 0.0
    %317 = vmatprep.subr.mxu0 0.0
    %318 = vmatpush1.msra.mxu0 0.0
    %319 = vmatprep.subr.mxu0 0.0
    %320 = vmatpush1.msra.mxu0 0.0
    %321 = vmatprep.subr.mxu0 0.0
    %322 = vmatpush1.msra.mxu0 0.0
    %323 = vmatprep.subr.mxu0 0.0
    %324 = vmatpush1.msra.mxu0 0.0
    %325 = vmatprep.subr.mxu0 0.0
    %326 = vmatpush1.msra.mxu0 0.0
    %327 = vmatprep.subr.mxu0 0.0
    %328 = vmatpush1.msra.mxu0 0.0
    %329 = vmatprep.subr.mxu0 0.0
    %330 = vmatpush1.msra.mxu0 0.0
    %331 = vmatprep.subr.mxu0 0.0
    %332 = vmatpush1.msra.mxu0 0.0
    %333 = vmatprep.subr.mxu0 0.0
    %334 = vmatpush1.msra.mxu0 0.0
    %335 = vmatprep.subr.mxu0 0.0
    %336 = vmatpush1.msra.mxu0 0.0
    %337 = vmatprep.subr.mxu0 0.0
    %338 = vmatpush1.msra.mxu0 0.0
    %339 = vmatprep.subr.mxu0 0.0
    %340 = vmatpush1.msra.mxu0 0.0
    %341 = vmatprep.subr.mxu0 0.0
    %342 = vmatpush1.msra.mxu0 0.0
    %343 = vmatprep.subr.mxu0 0.0
    %344 = vmatpush1.msra.mxu0 0.0
    %345 = vmatprep.mubr.f32.mxu0 0.0
    %346 = vmatmul.mubr.f32.gmra.mrb[0].mxu0 %v279
    %v347 = vpop.f32.mrb[0].mxu0
    %v348 = vadd.f32 %v275, %v347
    %v349 = vpop.f32.mrb[0].mxu0
    %350 = vdwg.mxu0
    %v351 = vld [vmem:[%s7] sm:$0xff]
    %v352 = vld [vmem:[%s7 + $0x8] sm:$0xff]
    %v353 = vld [vmem:[%s7 + $0x10] sm:$0xff]
    %v354 = vld [vmem:[%s7 + $0x18] sm:$0xff]
    %v355 = vld [vmem:[%s8] sm:$0x1]
    %v357 = vlaneseq
    %v358 = vshrl.u32 %v357, 7
    %v359 = vsub.s32 0, %v358
    %v360 = vrot.slane %v355, %v359
    %v363 = vsel %vm79, %v259, 0
    %v366 = vsel %vm79, %v260, 0
    %v369 = vsel %vm79, %v261, 0
    %v372 = vsel %vm79, %v262, 0
    %v375 = vsel %vm79, %v263, 0
    %v378 = vsel %vm79, %v264, 0
    %v381 = vsel %vm79, %v265, 0
    %v384 = vsel %vm79, %v266, 0
    %386 = vmatprep.subr.mxu0 0.0
    %387 = vmatpush1.msra.mxu0 %v351
    %388 = vmatprep.subr.mxu0 0.0
    %389 = vmatpush1.msra.mxu0 %v352
    %390 = vmatprep.subr.mxu0 0.0
    %391 = vmatpush1.msra.mxu0 %v353
    %392 = vmatprep.subr.mxu0 0.0
    %393 = vmatpush1.msra.mxu0 %v354
    %394 = vmatprep.subr.mxu0 0.0
    %395 = vmatpush1.msra.mxu0 0.0
    %396 = vmatprep.subr.mxu0 0.0
    %397 = vmatpush1.msra.mxu0 0.0
    %398 = vmatprep.subr.mxu0 0.0
    %399 = vmatpush1.msra.mxu0 0.0
    %400 = vmatprep.subr.mxu0 0.0
    %401 = vmatpush1.msra.mxu0 0.0
    %402 = vmatprep.subr.mxu0 0.0
    %403 = vmatpush1.msra.mxu0 0.0
    %404 = vmatprep.subr.mxu0 0.0
    %405 = vmatpush1.msra.mxu0 0.0
    %406 = vmatprep.subr.mxu0 0.0
    %407 = vmatpush1.msra.mxu0 0.0
    %408 = vmatprep.subr.mxu0 0.0
    %409 = vmatpush1.msra.mxu0 0.0
    %410 = vmatprep.subr.mxu0 0.0
    %411 = vmatpush1.msra.mxu0 0.0
    %412 = vmatprep.subr.mxu0 0.0
    %413 = vmatpush1.msra.mxu0 0.0
    %414 = vmatprep.subr.mxu0 0.0
    %415 = vmatpush1.msra.mxu0 0.0
    %416 = vmatprep.subr.mxu0 0.0
    %417 = vmatpush1.msra.mxu0 0.0
    %418 = vmatprep.subr.mxu0 0.0
    %419 = vmatpush1.msra.mxu0 0.0
    %420 = vmatprep.subr.mxu0 0.0
    %421 = vmatpush1.msra.mxu0 0.0
    %422 = vmatprep.subr.mxu0 0.0
    %423 = vmatpush1.msra.mxu0 0.0
    %424 = vmatprep.subr.mxu0 0.0
    %425 = vmatpush1.msra.mxu0 0.0
    %426 = vmatprep.subr.mxu0 0.0
    %427 = vmatpush1.msra.mxu0 0.0
    %428 = vmatprep.subr.mxu0 0.0
    %429 = vmatpush1.msra.mxu0 0.0
    %430 = vmatprep.subr.mxu0 0.0
    %431 = vmatpush1.msra.mxu0 0.0
    %432 = vmatprep.subr.mxu0 0.0
    %433 = vmatpush1.msra.mxu0 0.0
    %434 = vmatprep.subr.mxu0 0.0
    %435 = vmatpush1.msra.mxu0 0.0
    %436 = vmatprep.subr.mxu0 0.0
    %437 = vmatpush1.msra.mxu0 0.0
    %438 = vmatprep.subr.mxu0 0.0
    %439 = vmatpush1.msra.mxu0 0.0
    %440 = vmatprep.subr.mxu0 0.0
    %441 = vmatpush1.msra.mxu0 0.0
    %442 = vmatprep.subr.mxu0 0.0
    %443 = vmatpush1.msra.mxu0 0.0
    %444 = vmatprep.subr.mxu0 0.0
    %445 = vmatpush1.msra.mxu0 0.0
    %446 = vmatprep.subr.mxu0 0.0
    %447 = vmatpush1.msra.mxu0 0.0
    %448 = vmatprep.subr.mxu0 0.0
    %449 = vmatpush1.msra.mxu0 0.0
    %450 = vmatprep.mubr.f32.mxu0 0.0
    %451 = vmatmul.mubr.f32.gmra.mrb[0].mxu0 %v363
    %v452 = vpop.f32.mrb[0].mxu0
    %v453 = vadd.f32 %v360, %v452
    %v454 = vpop.f32.mrb[0].mxu0
    %455 = vmatprep.mubr.f32.mxu0 0.0
    %456 = vmatmul.mubr.f32.gmra.mrb[0].mxu0 %v366
    %v457 = vpop.f32.mrb[0].mxu0
    %v458 = vadd.f32 %v360, %v457
    %v459 = vpop.f32.mrb[0].mxu0
    %460 = vmatprep.mubr.f32.mxu0 0.0
    %461 = vmatmul.mubr.f32.gmra.mrb[0].mxu0 %v369
    %v462 = vpop.f32.mrb[0].mxu0
    %v463 = vadd.f32 %v360, %v462
    %v464 = vpop.f32.mrb[0].mxu0
    %465 = vmatprep.mubr.f32.mxu0 0.0
    %466 = vmatmul.mubr.f32.gmra.mrb[0].mxu0 %v372
    %v467 = vpop.f32.mrb[0].mxu0
    %v468 = vadd.f32 %v360, %v467
    %v469 = vpop.f32.mrb[0].mxu0
    %470 = vmatprep.mubr.f32.mxu0 0.0
    %471 = vmatmul.mubr.f32.gmra.mrb[0].mxu0 %v375
    %v472 = vpop.f32.mrb[0].mxu0
    %v473 = vadd.f32 %v360, %v472
    %v474 = vpop.f32.mrb[0].mxu0
    %475 = vmatprep.mubr.f32.mxu0 0.0
    %476 = vmatmul.mubr.f32.gmra.mrb[0].mxu0 %v378
    %v477 = vpop.f32.mrb[0].mxu0
    %v478 = vadd.f32 %v360, %v477
    %v479 = vpop.f32.mrb[0].mxu0
    %480 = vmatprep.mubr.f32.mxu0 0.0
    %481 = vmatmul.mubr.f32.gmra.mrb[0].mxu0 %v381
    %v482 = vpop.f32.mrb[0].mxu0
    %v483 = vadd.f32 %v360, %v482
    %v484 = vpop.f32.mrb[0].mxu0
    %485 = vmatprep.mubr.f32.mxu0 0.0
    %486 = vmatmul.mubr.f32.gmra.mrb[0].mxu0 %v384
    %v487 = vpop.f32.mrb[0].mxu0
    %v488 = vadd.f32 %v360, %v487
    %v489 = vpop.f32.mrb[0].mxu0
    %490 = vdwg.mxu0
    %v491 = vld [vmem:[%s16] sm:$0xff]
    %v492 = vld [vmem:[%s16 + $0x8] sm:$0xff]
    %v493 = vld [vmem:[%s16 + $0x10] sm:$0xff]
    %v494 = vld [vmem:[%s16 + $0x18] sm:$0xff]
    %v495 = vld [vmem:[%s16 + $0x20] sm:$0xff]
    %v496 = vld [vmem:[%s16 + $0x28] sm:$0xff]
    %v497 = vld [vmem:[%s16 + $0x30] sm:$0xff]
    %v498 = vld [vmem:[%s16 + $0x38] sm:$0xff]
    %vm499 = vcmask 31744
    %v501 = vsel %vm499, %v491, 0
    %v504 = vsel %vm499, %v492, 0
    %v507 = vsel %vm499, %v493, 0
    %v510 = vsel %vm499, %v494, 0
    %v513 = vsel %vm499, %v495, 0
    %v516 = vsel %vm499, %v496, 0
    %v519 = vsel %vm499, %v497, 0
    %v522 = vsel %vm499, %v498, 0
    %vm524 = vcmask 1043456
    %v526 = vsel %vm524, %v348, 0
    %528 = vmatprep.subr.mxu0 0.0
    %529 = vmatpush1.msra.mxu0 %v526
    %530 = vmatprep.subr.mxu0 0.0
    %531 = vmatpush1.msra.mxu0 0.0
    %532 = vmatprep.subr.mxu0 0.0
    %533 = vmatpush1.msra.mxu0 0.0
    %534 = vmatprep.subr.mxu0 0.0
    %535 = vmatpush1.msra.mxu0 0.0
    %536 = vmatprep.subr.mxu0 0.0
    %537 = vmatpush1.msra.mxu0 0.0
    %538 = vmatprep.subr.mxu0 0.0
    %539 = vmatpush1.msra.mxu0 0.0
    %540 = vmatprep.subr.mxu0 0.0
    %541 = vmatpush1.msra.mxu0 0.0
    %542 = vmatprep.subr.mxu0 0.0
    %543 = vmatpush1.msra.mxu0 0.0
    %544 = vmatprep.subr.mxu0 0.0
    %545 = vmatpush1.msra.mxu0 0.0
    %546 = vmatprep.subr.mxu0 0.0
    %547 = vmatpush1.msra.mxu0 0.0
    %548 = vmatprep.subr.mxu0 0.0
    %549 = vmatpush1.msra.mxu0 0.0
    %550 = vmatprep.subr.mxu0 0.0
    %551 = vmatpush1.msra.mxu0 0.0
    %552 = vmatprep.subr.mxu0 0.0
    %553 = vmatpush1.msra.mxu0 0.0
    %554 = vmatprep.subr.mxu0 0.0
    %555 = vmatpush1.msra.mxu0 0.0
    %556 = vmatprep.subr.mxu0 0.0
    %557 = vmatpush1.msra.mxu0 0.0
    %558 = vmatprep.subr.mxu0 0.0
    %559 = vmatpush1.msra.mxu0 0.0
    %560 = vmatprep.subr.mxu0 0.0
    %561 = vmatpush1.msra.mxu0 0.0
    %562 = vmatprep.subr.mxu0 0.0
    %563 = vmatpush1.msra.mxu0 0.0
    %564 = vmatprep.subr.mxu0 0.0
    %565 = vmatpush1.msra.mxu0 0.0
    %566 = vmatprep.subr.mxu0 0.0
    %567 = vmatpush1.msra.mxu0 0.0
    %568 = vmatprep.subr.mxu0 0.0
    %569 = vmatpush1.msra.mxu0 0.0
    %570 = vmatprep.subr.mxu0 0.0
    %571 = vmatpush1.msra.mxu0 0.0
    %572 = vmatprep.subr.mxu0 0.0
    %573 = vmatpush1.msra.mxu0 0.0
    %574 = vmatprep.subr.mxu0 0.0
    %575 = vmatpush1.msra.mxu0 0.0
    %576 = vmatprep.subr.mxu0 0.0
    %577 = vmatpush1.msra.mxu0 0.0
    %578 = vmatprep.subr.mxu0 0.0
    %579 = vmatpush1.msra.mxu0 0.0
    %580 = vmatprep.subr.mxu0 0.0
    %581 = vmatpush1.msra.mxu0 0.0
    %582 = vmatprep.subr.mxu0 0.0
    %583 = vmatpush1.msra.mxu0 0.0
    %584 = vmatprep.subr.mxu0 0.0
    %585 = vmatpush1.msra.mxu0 0.0
    %586 = vmatprep.subr.mxu0 0.0
    %587 = vmatpush1.msra.mxu0 0.0
    %588 = vmatprep.subr.mxu0 0.0
    %589 = vmatpush1.msra.mxu0 0.0
    %590 = vmatprep.subr.mxu0 0.0
    %591 = vmatpush1.msra.mxu0 0.0
    %592 = vmatprep.mubr.f32.mxu0 0.0
    %593 = vmatmul.mubr.f32.gmra.mrb[0].mxu0 %v501
    %v594 = vpop.f32.mrb[0].mxu0
    %v595 = vadd.f32 0.0, %v594
    %v596 = vpop.f32.mrb[0].mxu0
    %597 = vmatprep.mubr.f32.mxu0 0.0
    %598 = vmatmul.mubr.f32.gmra.mrb[0].mxu0 %v504
    %v599 = vpop.f32.mrb[0].mxu0
    %v600 = vadd.f32 0.0, %v599
    %v601 = vpop.f32.mrb[0].mxu0
    %602 = vmatprep.mubr.f32.mxu0 0.0
    %603 = vmatmul.mubr.f32.gmra.mrb[0].mxu0 %v507
    %v604 = vpop.f32.mrb[0].mxu0
    %v605 = vadd.f32 0.0, %v604
    %v606 = vpop.f32.mrb[0].mxu0
    %607 = vmatprep.mubr.f32.mxu0 0.0
    %608 = vmatmul.mubr.f32.gmra.mrb[0].mxu0 %v510
    %v609 = vpop.f32.mrb[0].mxu0
    %v610 = vadd.f32 0.0, %v609
    %v611 = vpop.f32.mrb[0].mxu0
    %612 = vmatprep.mubr.f32.mxu0 0.0
    %613 = vmatmul.mubr.f32.gmra.mrb[0].mxu0 %v513
    %v614 = vpop.f32.mrb[0].mxu0
    %v615 = vadd.f32 0.0, %v614
    %v616 = vpop.f32.mrb[0].mxu0
    %617 = vmatprep.mubr.f32.mxu0 0.0
    %618 = vmatmul.mubr.f32.gmra.mrb[0].mxu0 %v516
    %v619 = vpop.f32.mrb[0].mxu0
    %v620 = vadd.f32 0.0, %v619
    %v621 = vpop.f32.mrb[0].mxu0
    %622 = vmatprep.mubr.f32.mxu0 0.0
    %623 = vmatmul.mubr.f32.gmra.mrb[0].mxu0 %v519
    %v624 = vpop.f32.mrb[0].mxu0
    %v625 = vadd.f32 0.0, %v624
    %v626 = vpop.f32.mrb[0].mxu0
    %627 = vmatprep.mubr.f32.mxu0 0.0
    %628 = vmatmul.mubr.f32.gmra.mrb[0].mxu0 %v522
    %v629 = vpop.f32.mrb[0].mxu0
    %v630 = vadd.f32 0.0, %v629
    %v631 = vpop.f32.mrb[0].mxu0
    %632 = vdwg.mxu0
    %v633 = vmul.f32 %v453, %v595
    %v634 = vmul.f32 %v458, %v600
    %v635 = vmul.f32 %v463, %v605
    %v636 = vmul.f32 %v468, %v610
    %v637 = vmul.f32 %v473, %v615
    %v638 = vmul.f32 %v478, %v620
    %v639 = vmul.f32 %v483, %v625
    %v640 = vmul.f32 %v488, %v630
    %v641 = vld [vmem:[%s14] sm:$0xff]
    %v642 = vld [vmem:[%s14 + $0x8] sm:$0xff]
    %v643 = vld [vmem:[%s14 + $0x10] sm:$0xff]
    %v644 = vld [vmem:[%s14 + $0x18] sm:$0xff]
    %v646 = vsel %vm79, %v633, 0
    %v649 = vsel %vm79, %v634, 0
    %v652 = vsel %vm79, %v635, 0
    %v655 = vsel %vm79, %v636, 0
    %v658 = vsel %vm79, %v637, 0
    %v661 = vsel %vm79, %v638, 0
    %v664 = vsel %vm79, %v639, 0
    %v667 = vsel %vm79, %v640, 0
    %669 = vmatprep.subr.mxu0 0.0
    %670 = vmatpush1.msra.mxu0 %v641
    %671 = vmatprep.subr.mxu0 0.0
    %672 = vmatpush1.msra.mxu0 %v642
    %673 = vmatprep.subr.mxu0 0.0
    %674 = vmatpush1.msra.mxu0 %v643
    %675 = vmatprep.subr.mxu0 0.0
    %676 = vmatpush1.msra.mxu0 %v644
    %677 = vmatprep.subr.mxu0 0.0
    %678 = vmatpush1.msra.mxu0 0.0
    %679 = vmatprep.subr.mxu0 0.0
    %680 = vmatpush1.msra.mxu0 0.0
    %681 = vmatprep.subr.mxu0 0.0
    %682 = vmatpush1.msra.mxu0 0.0
    %683 = vmatprep.subr.mxu0 0.0
    %684 = vmatpush1.msra.mxu0 0.0
    %685 = vmatprep.subr.mxu0 0.0
    %686 = vmatpush1.msra.mxu0 0.0
    %687 = vmatprep.subr.mxu0 0.0
    %688 = vmatpush1.msra.mxu0 0.0
    %689 = vmatprep.subr.mxu0 0.0
    %690 = vmatpush1.msra.mxu0 0.0
    %691 = vmatprep.subr.mxu0 0.0
    %692 = vmatpush1.msra.mxu0 0.0
    %693 = vmatprep.subr.mxu0 0.0
    %694 = vmatpush1.msra.mxu0 0.0
    %695 = vmatprep.subr.mxu0 0.0
    %696 = vmatpush1.msra.mxu0 0.0
    %697 = vmatprep.subr.mxu0 0.0
    %698 = vmatpush1.msra.mxu0 0.0
    %699 = vmatprep.subr.mxu0 0.0
    %700 = vmatpush1.msra.mxu0 0.0
    %701 = vmatprep.subr.mxu0 0.0
    %702 = vmatpush1.msra.mxu0 0.0
    %703 = vmatprep.subr.mxu0 0.0
    %704 = vmatpush1.msra.mxu0 0.0
    %705 = vmatprep.subr.mxu0 0.0
    %706 = vmatpush1.msra.mxu0 0.0
    %707 = vmatprep.subr.mxu0 0.0
    %708 = vmatpush1.msra.mxu0 0.0
    %709 = vmatprep.subr.mxu0 0.0
    %710 = vmatpush1.msra.mxu0 0.0
    %711 = vmatprep.subr.mxu0 0.0
    %712 = vmatpush1.msra.mxu0 0.0
    %713 = vmatprep.subr.mxu0 0.0
    %714 = vmatpush1.msra.mxu0 0.0
    %715 = vmatprep.subr.mxu0 0.0
    %716 = vmatpush1.msra.mxu0 0.0
    %717 = vmatprep.subr.mxu0 0.0
    %718 = vmatpush1.msra.mxu0 0.0
    %719 = vmatprep.subr.mxu0 0.0
    %720 = vmatpush1.msra.mxu0 0.0
    %721 = vmatprep.subr.mxu0 0.0
    %722 = vmatpush1.msra.mxu0 0.0
    %723 = vmatprep.subr.mxu0 0.0
    %724 = vmatpush1.msra.mxu0 0.0
    %725 = vmatprep.subr.mxu0 0.0
    %726 = vmatpush1.msra.mxu0 0.0
    %727 = vmatprep.subr.mxu0 0.0
    %728 = vmatpush1.msra.mxu0 0.0
    %729 = vmatprep.subr.mxu0 0.0
    %730 = vmatpush1.msra.mxu0 0.0
    %731 = vmatprep.subr.mxu0 0.0
    %732 = vmatpush1.msra.mxu0 0.0
    %733 = vmatprep.mubr.f32.mxu0 0.0
    %734 = vmatmul.mubr.f32.gmra.mrb[0].mxu0 %v646
    %v735 = vpop.f32.mrb[0].mxu0
    %v736 = vadd.f32 0.0, %v735
    %v737 = vpop.f32.mrb[0].mxu0
    %738 = vmatprep.mubr.f32.mxu0 0.0
    %739 = vmatmul.mubr.f32.gmra.mrb[0].mxu0 %v649
    %v740 = vpop.f32.mrb[0].mxu0
    %v741 = vadd.f32 0.0, %v740
    %v742 = vpop.f32.mrb[0].mxu0
    %743 = vmatprep.mubr.f32.mxu0 0.0
    %744 = vmatmul.mubr.f32.gmra.mrb[0].mxu0 %v652
    %v745 = vpop.f32.mrb[0].mxu0
    %v746 = vadd.f32 0.0, %v745
    %v747 = vpop.f32.mrb[0].mxu0
    %748 = vmatprep.mubr.f32.mxu0 0.0
    %749 = vmatmul.mubr.f32.gmra.mrb[0].mxu0 %v655
    %v750 = vpop.f32.mrb[0].mxu0
    %v751 = vadd.f32 0.0, %v750
    %v752 = vpop.f32.mrb[0].mxu0
    %753 = vmatprep.mubr.f32.mxu0 0.0
    %754 = vmatmul.mubr.f32.gmra.mrb[0].mxu0 %v658
    %v755 = vpop.f32.mrb[0].mxu0
    %v756 = vadd.f32 0.0, %v755
    %v757 = vpop.f32.mrb[0].mxu0
    %758 = vmatprep.mubr.f32.mxu0 0.0
    %759 = vmatmul.mubr.f32.gmra.mrb[0].mxu0 %v661
    %v760 = vpop.f32.mrb[0].mxu0
    %v761 = vadd.f32 0.0, %v760
    %v762 = vpop.f32.mrb[0].mxu0
    %763 = vmatprep.mubr.f32.mxu0 0.0
    %764 = vmatmul.mubr.f32.gmra.mrb[0].mxu0 %v664
    %v765 = vpop.f32.mrb[0].mxu0
    %v766 = vadd.f32 0.0, %v765
    %v767 = vpop.f32.mrb[0].mxu0
    %768 = vmatprep.mubr.f32.mxu0 0.0
    %769 = vmatmul.mubr.f32.gmra.mrb[0].mxu0 %v667
    %v770 = vpop.f32.mrb[0].mxu0
    %v771 = vadd.f32 0.0, %v770
    %v772 = vpop.f32.mrb[0].mxu0
    %773 = vdwg.mxu0
    %v774 = vsel %vm499, %v736, -inf
    %v775 = vsel %vm499, %v741, -inf
    %v776 = vmax.f32 %v774, %v775
    %v777 = vrot.slane %v776, 4
    %v778 = vmax.f32 %v776, %v777
    %v779 = vrot.slane %v778, 2
    %v780 = vmax.f32 %v778, %v779
    %v781 = vrot.slane %v780, 1
    %v782 = vmax.f32 %v780, %v781
    %v783 = vsel %vm499, %v746, -inf
    %v784 = vsel %vm499, %v751, -inf
    %v785 = vmax.f32 %v783, %v784
    %v786 = vrot.slane %v785, 4
    %v787 = vmax.f32 %v785, %v786
    %v788 = vrot.slane %v787, 2
    %v789 = vmax.f32 %v787, %v788
    %v790 = vrot.slane %v789, 1
    %v791 = vmax.f32 %v789, %v790
    %v792 = vsel %vm499, %v756, -inf
    %v793 = vsel %vm499, %v761, -inf
    %v794 = vmax.f32 %v792, %v793
    %v795 = vrot.slane %v794, 4
    %v796 = vmax.f32 %v794, %v795
    %v797 = vrot.slane %v796, 2
    %v798 = vmax.f32 %v796, %v797
    %v799 = vrot.slane %v798, 1
    %v800 = vmax.f32 %v798, %v799
    %v801 = vsel %vm499, %v766, -inf
    %v802 = vsel %vm499, %v771, -inf
    %v803 = vmax.f32 %v801, %v802
    %v804 = vrot.slane %v803, 4
    %v805 = vmax.f32 %v803, %v804
    %v806 = vrot.slane %v805, 2
    %v807 = vmax.f32 %v805, %v806
    %v808 = vrot.slane %v807, 1
    %v809 = vmax.f32 %v807, %v808
    %v810 = vsel %vm245, %v782, %v791
    %v811 = vsel %vm247, %v810, %v800
    %v812 = vsel %vm249, %v811, %v809
    %v814 = vsel %vm524, %v812, 0
    %816 = vmatprep.subr.mxu0 0.0
    %817 = vmatpush1.msra.mxu0 %v814
    %818 = vmatprep.subr.mxu0 0.0
    %819 = vmatpush1.msra.mxu0 0.0
    %820 = vmatprep.subr.mxu0 0.0
    %821 = vmatpush1.msra.mxu0 0.0
    %822 = vmatprep.subr.mxu0 0.0
    %823 = vmatpush1.msra.mxu0 0.0
    %824 = vmatprep.subr.mxu0 0.0
    %825 = vmatpush1.msra.mxu0 0.0
    %826 = vmatprep.subr.mxu0 0.0
    %827 = vmatpush1.msra.mxu0 0.0
    %828 = vmatprep.subr.mxu0 0.0
    %829 = vmatpush1.msra.mxu0 0.0
    %830 = vmatprep.subr.mxu0 0.0
    %831 = vmatpush1.msra.mxu0 0.0
    %832 = vmatprep.subr.mxu0 0.0
    %833 = vmatpush1.msra.mxu0 0.0
    %834 = vmatprep.subr.mxu0 0.0
    %835 = vmatpush1.msra.mxu0 0.0
    %836 = vmatprep.subr.mxu0 0.0
    %837 = vmatpush1.msra.mxu0 0.0
    %838 = vmatprep.subr.mxu0 0.0
    %839 = vmatpush1.msra.mxu0 0.0
    %840 = vmatprep.subr.mxu0 0.0
    %841 = vmatpush1.msra.mxu0 0.0
    %842 = vmatprep.subr.mxu0 0.0
    %843 = vmatpush1.msra.mxu0 0.0
    %844 = vmatprep.subr.mxu0 0.0
    %845 = vmatpush1.msra.mxu0 0.0
    %846 = vmatprep.subr.mxu0 0.0
    %847 = vmatpush1.msra.mxu0 0.0
    %848 = vmatprep.subr.mxu0 0.0
    %849 = vmatpush1.msra.mxu0 0.0
    %850 = vmatprep.subr.mxu0 0.0
    %851 = vmatpush1.msra.mxu0 0.0
    %852 = vmatprep.subr.mxu0 0.0
    %853 = vmatpush1.msra.mxu0 0.0
    %854 = vmatprep.subr.mxu0 0.0
    %855 = vmatpush1.msra.mxu0 0.0
    %856 = vmatprep.subr.mxu0 0.0
    %857 = vmatpush1.msra.mxu0 0.0
    %858 = vmatprep.subr.mxu0 0.0
    %859 = vmatpush1.msra.mxu0 0.0
    %860 = vmatprep.subr.mxu0 0.0
    %861 = vmatpush1.msra.mxu0 0.0
    %862 = vmatprep.subr.mxu0 0.0
    %863 = vmatpush1.msra.mxu0 0.0
    %864 = vmatprep.subr.mxu0 0.0
    %865 = vmatpush1.msra.mxu0 0.0
    %866 = vmatprep.subr.mxu0 0.0
    %867 = vmatpush1.msra.mxu0 0.0
    %868 = vmatprep.subr.mxu0 0.0
    %869 = vmatpush1.msra.mxu0 0.0
    %870 = vmatprep.subr.mxu0 0.0
    %871 = vmatpush1.msra.mxu0 0.0
    %872 = vmatprep.subr.mxu0 0.0
    %873 = vmatpush1.msra.mxu0 0.0
    %874 = vmatprep.subr.mxu0 0.0
    %875 = vmatpush1.msra.mxu0 0.0
    %876 = vmatprep.subr.mxu0 0.0
    %877 = vmatpush1.msra.mxu0 0.0
    %878 = vmatprep.subr.mxu0 0.0
    %879 = vmatpush1.msra.mxu0 0.0
    %880 = vmatprep.mubr.f32.mxu0 0.0
    %881 = vmatmul.mubr.f32.gmra.mrb[0].mxu0 %v501
    %v882 = vpop.f32.mrb[0].mxu0
    %v883 = vadd.f32 0.0, %v882
    %v884 = vpop.f32.mrb[0].mxu0
    %885 = vmatprep.mubr.f32.mxu0 0.0
    %886 = vmatmul.mubr.f32.gmra.mrb[0].mxu0 %v504
    %v887 = vpop.f32.mrb[0].mxu0
    %v888 = vadd.f32 0.0, %v887
    %v889 = vpop.f32.mrb[0].mxu0
    %890 = vmatprep.mubr.f32.mxu0 0.0
    %891 = vmatmul.mubr.f32.gmra.mrb[0].mxu0 %v507
    %v892 = vpop.f32.mrb[0].mxu0
    %v893 = vadd.f32 0.0, %v892
    %v894 = vpop.f32.mrb[0].mxu0
    %895 = vmatprep.mubr.f32.mxu0 0.0
    %896 = vmatmul.mubr.f32.gmra.mrb[0].mxu0 %v510
    %v897 = vpop.f32.mrb[0].mxu0
    %v898 = vadd.f32 0.0, %v897
    %v899 = vpop.f32.mrb[0].mxu0
    %900 = vmatprep.mubr.f32.mxu0 0.0
    %901 = vmatmul.mubr.f32.gmra.mrb[0].mxu0 %v513
    %v902 = vpop.f32.mrb[0].mxu0
    %v903 = vadd.f32 0.0, %v902
    %v904 = vpop.f32.mrb[0].mxu0
    %905 = vmatprep.mubr.f32.mxu0 0.0
    %906 = vmatmul.mubr.f32.gmra.mrb[0].mxu0 %v516
    %v907 = vpop.f32.mrb[0].mxu0
    %v908 = vadd.f32 0.0, %v907
    %v909 = vpop.f32.mrb[0].mxu0
    %910 = vmatprep.mubr.f32.mxu0 0.0
    %911 = vmatmul.mubr.f32.gmra.mrb[0].mxu0 %v519
    %v912 = vpop.f32.mrb[0].mxu0
    %v913 = vadd.f32 0.0, %v912
    %v914 = vpop.f32.mrb[0].mxu0
    %915 = vmatprep.mubr.f32.mxu0 0.0
    %916 = vmatmul.mubr.f32.gmra.mrb[0].mxu0 %v522
    %v917 = vpop.f32.mrb[0].mxu0
    %v918 = vadd.f32 0.0, %v917
    %v919 = vpop.f32.mrb[0].mxu0
    %920 = vdwg.mxu0
    %v921 = vsub.f32 %v736, %v883
    %v922 = vsub.f32 %v741, %v888
    %v923 = vsub.f32 %v746, %v893
    %v924 = vsub.f32 %v751, %v898
    %v925 = vsub.f32 %v756, %v903
    %v926 = vsub.f32 %v761, %v908
    %v927 = vsub.f32 %v766, %v913
    %v928 = vsub.f32 %v771, %v918
    %v929 = vmul.f32 %v921, 1.442695
    %v930 = vpow.pop %v929
    %v931 = vmul.f32 %v922, 1.442695
    %v932 = vpow.pop %v931
    %v933 = vmul.f32 %v923, 1.442695
    %v934 = vpow.pop %v933
    %v935 = vmul.f32 %v924, 1.442695
    %v936 = vpow.pop %v935
    %v937 = vmul.f32 %v925, 1.442695
    %v938 = vpow.pop %v937
    %v939 = vmul.f32 %v926, 1.442695
    %v940 = vpow.pop %v939
    %v941 = vmul.f32 %v927, 1.442695
    %v942 = vpow.pop %v941
    %v943 = vmul.f32 %v928, 1.442695
    %v944 = vpow.pop %v943
    %v945 = vld [vmem:[%s17] sm:$0xf]
    %vm946 = vcmask 523264
    %v948 = vsel %vm946, %v945, 0
    %950 = vmatprep.subr.mxu0 0.0
    %951 = vmatpush1.msra.mxu0 %v930
    %952 = vmatprep.subr.mxu0 0.0
    %953 = vmatpush1.msra.mxu0 %v932
    %954 = vmatprep.subr.mxu0 0.0
    %955 = vmatpush1.msra.mxu0 %v934
    %956 = vmatprep.subr.mxu0 0.0
    %957 = vmatpush1.msra.mxu0 %v936
    %958 = vmatprep.subr.mxu0 0.0
    %959 = vmatpush1.msra.mxu0 %v938
    %960 = vmatprep.subr.mxu0 0.0
    %961 = vmatpush1.msra.mxu0 %v940
    %962 = vmatprep.subr.mxu0 0.0
    %963 = vmatpush1.msra.mxu0 %v942
    %964 = vmatprep.subr.mxu0 0.0
    %965 = vmatpush1.msra.mxu0 %v944
    %966 = vmatprep.subr.mxu0 0.0
    %967 = vmatpush1.msra.mxu0 0.0
    %968 = vmatprep.subr.mxu0 0.0
    %969 = vmatpush1.msra.mxu0 0.0
    %970 = vmatprep.subr.mxu0 0.0
    %971 = vmatpush1.msra.mxu0 0.0
    %972 = vmatprep.subr.mxu0 0.0
    %973 = vmatpush1.msra.mxu0 0.0
    %974 = vmatprep.subr.mxu0 0.0
    %975 = vmatpush1.msra.mxu0 0.0
    %976 = vmatprep.subr.mxu0 0.0
    %977 = vmatpush1.msra.mxu0 0.0
    %978 = vmatprep.subr.mxu0 0.0
    %979 = vmatpush1.msra.mxu0 0.0
    %980 = vmatprep.subr.mxu0 0.0
    %981 = vmatpush1.msra.mxu0 0.0
    %982 = vmatprep.subr.mxu0 0.0
    %983 = vmatpush1.msra.mxu0 0.0
    %984 = vmatprep.subr.mxu0 0.0
    %985 = vmatpush1.msra.mxu0 0.0
    %986 = vmatprep.subr.mxu0 0.0
    %987 = vmatpush1.msra.mxu0 0.0
    %988 = vmatprep.subr.mxu0 0.0
    %989 = vmatpush1.msra.mxu0 0.0
    %990 = vmatprep.subr.mxu0 0.0
    %991 = vmatpush1.msra.mxu0 0.0
    %992 = vmatprep.subr.mxu0 0.0
    %993 = vmatpush1.msra.mxu0 0.0
    %994 = vmatprep.subr.mxu0 0.0
    %995 = vmatpush1.msra.mxu0 0.0
    %996 = vmatprep.subr.mxu0 0.0
    %997 = vmatpush1.msra.mxu0 0.0
    %998 = vmatprep.subr.mxu0 0.0
    %999 = vmatpush1.msra.mxu0 0.0
    %1000 = vmatprep.subr.mxu0 0.0
    %1001 = vmatpush1.msra.mxu0 0.0
    %1002 = vmatprep.subr.mxu0 0.0
    %1003 = vmatpush1.msra.mxu0 0.0
    %1004 = vmatprep.subr.mxu0 0.0
    %1005 = vmatpush1.msra.mxu0 0.0
    %1006 = vmatprep.subr.mxu0 0.0
    %1007 = vmatpush1.msra.mxu0 0.0
    %1008 = vmatprep.subr.mxu0 0.0
    %1009 = vmatpush1.msra.mxu0 0.0
    %1010 = vmatprep.subr.mxu0 0.0
    %1011 = vmatpush1.msra.mxu0 0.0
    %1012 = vmatprep.subr.mxu0 0.0
    %1013 = vmatpush1.msra.mxu0 0.0
    %1014 = vmatprep.mubr.f32.mxu0 0.0
    %1015 = vmatmul.mubr.f32.gmra.mrb[0].mxu0 %v948
    %v1016 = vpop.f32.mrb[0].mxu0
    %v1017 = vadd.f32 0.0, %v1016
    %v1018 = vpop.f32.mrb[0].mxu0
    %1019 = vdwg.mxu0
    %v1020 = vrcp.pop %v1017
    %v1022 = vsel %vm524, %v1020, 0
    %1024 = vmatprep.subr.mxu0 0.0
    %1025 = vmatpush1.msra.mxu0 %v1022
    %1026 = vmatprep.subr.mxu0 0.0
    %1027 = vmatpush1.msra.mxu0 0.0
    %1028 = vmatprep.subr.mxu0 0.0
    %1029 = vmatpush1.msra.mxu0 0.0
    %1030 = vmatprep.subr.mxu0 0.0
    %1031 = vmatpush1.msra.mxu0 0.0
    %1032 = vmatprep.subr.mxu0 0.0
    %1033 = vmatpush1.msra.mxu0 0.0
    %1034 = vmatprep.subr.mxu0 0.0
    %1035 = vmatpush1.msra.mxu0 0.0
    %1036 = vmatprep.subr.mxu0 0.0
    %1037 = vmatpush1.msra.mxu0 0.0
    %1038 = vmatprep.subr.mxu0 0.0
    %1039 = vmatpush1.msra.mxu0 0.0
    %1040 = vmatprep.subr.mxu0 0.0
    %1041 = vmatpush1.msra.mxu0 0.0
    %1042 = vmatprep.subr.mxu0 0.0
    %1043 = vmatpush1.msra.mxu0 0.0
    %1044 = vmatprep.subr.mxu0 0.0
    %1045 = vmatpush1.msra.mxu0 0.0
    %1046 = vmatprep.subr.mxu0 0.0
    %1047 = vmatpush1.msra.mxu0 0.0
    %1048 = vmatprep.subr.mxu0 0.0
    %1049 = vmatpush1.msra.mxu0 0.0
    %1050 = vmatprep.subr.mxu0 0.0
    %1051 = vmatpush1.msra.mxu0 0.0
    %1052 = vmatprep.subr.mxu0 0.0
    %1053 = vmatpush1.msra.mxu0 0.0
    %1054 = vmatprep.subr.mxu0 0.0
    %1055 = vmatpush1.msra.mxu0 0.0
    %1056 = vmatprep.subr.mxu0 0.0
    %1057 = vmatpush1.msra.mxu0 0.0
    %1058 = vmatprep.subr.mxu0 0.0
    %1059 = vmatpush1.msra.mxu0 0.0
    %1060 = vmatprep.subr.mxu0 0.0
    %1061 = vmatpush1.msra.mxu0 0.0
    %1062 = vmatprep.subr.mxu0 0.0
    %1063 = vmatpush1.msra.mxu0 0.0
    %1064 = vmatprep.subr.mxu0 0.0
    %1065 = vmatpush1.msra.mxu0 0.0
    %1066 = vmatprep.subr.mxu0 0.0
    %1067 = vmatpush1.msra.mxu0 0.0
    %1068 = vmatprep.subr.mxu0 0.0
    %1069 = vmatpush1.msra.mxu0 0.0
    %1070 = vmatprep.subr.mxu0 0.0
    %1071 = vmatpush1.msra.mxu0 0.0
    %1072 = vmatprep.subr.mxu0 0.0
    %1073 = vmatpush1.msra.mxu0 0.0
    %1074 = vmatprep.subr.mxu0 0.0
    %1075 = vmatpush1.msra.mxu0 0.0
    %1076 = vmatprep.subr.mxu0 0.0
    %1077 = vmatpush1.msra.mxu0 0.0
    %1078 = vmatprep.subr.mxu0 0.0
    %1079 = vmatpush1.msra.mxu0 0.0
    %1080 = vmatprep.subr.mxu0 0.0
    %1081 = vmatpush1.msra.mxu0 0.0
    %1082 = vmatprep.subr.mxu0 0.0
    %1083 = vmatpush1.msra.mxu0 0.0
    %1084 = vmatprep.subr.mxu0 0.0
    %1085 = vmatpush1.msra.mxu0 0.0
    %1086 = vmatprep.subr.mxu0 0.0
    %1087 = vmatpush1.msra.mxu0 0.0
    %1088 = vmatprep.mubr.f32.mxu0 0.0
    %1089 = vmatmul.mubr.f32.gmra.mrb[0].mxu0 %v501
    %v1090 = vpop.f32.mrb[0].mxu0
    %v1091 = vadd.f32 0.0, %v1090
    %v1092 = vpop.f32.mrb[0].mxu0
    %1093 = vmatprep.mubr.f32.mxu0 0.0
    %1094 = vmatmul.mubr.f32.gmra.mrb[0].mxu0 %v504
    %v1095 = vpop.f32.mrb[0].mxu0
    %v1096 = vadd.f32 0.0, %v1095
    %v1097 = vpop.f32.mrb[0].mxu0
    %1098 = vmatprep.mubr.f32.mxu0 0.0
    %1099 = vmatmul.mubr.f32.gmra.mrb[0].mxu0 %v507
    %v1100 = vpop.f32.mrb[0].mxu0
    %v1101 = vadd.f32 0.0, %v1100
    %v1102 = vpop.f32.mrb[0].mxu0
    %1103 = vmatprep.mubr.f32.mxu0 0.0
    %1104 = vmatmul.mubr.f32.gmra.mrb[0].mxu0 %v510
    %v1105 = vpop.f32.mrb[0].mxu0
    %v1106 = vadd.f32 0.0, %v1105
    %v1107 = vpop.f32.mrb[0].mxu0
    %1108 = vmatprep.mubr.f32.mxu0 0.0
    %1109 = vmatmul.mubr.f32.gmra.mrb[0].mxu0 %v513
    %v1110 = vpop.f32.mrb[0].mxu0
    %v1111 = vadd.f32 0.0, %v1110
    %v1112 = vpop.f32.mrb[0].mxu0
    %1113 = vmatprep.mubr.f32.mxu0 0.0
    %1114 = vmatmul.mubr.f32.gmra.mrb[0].mxu0 %v516
    %v1115 = vpop.f32.mrb[0].mxu0
    %v1116 = vadd.f32 0.0, %v1115
    %v1117 = vpop.f32.mrb[0].mxu0
    %1118 = vmatprep.mubr.f32.mxu0 0.0
    %1119 = vmatmul.mubr.f32.gmra.mrb[0].mxu0 %v519
    %v1120 = vpop.f32.mrb[0].mxu0
    %v1121 = vadd.f32 0.0, %v1120
    %v1122 = vpop.f32.mrb[0].mxu0
    %1123 = vmatprep.mubr.f32.mxu0 0.0
    %1124 = vmatmul.mubr.f32.gmra.mrb[0].mxu0 %v522
    %v1125 = vpop.f32.mrb[0].mxu0
    %v1126 = vadd.f32 0.0, %v1125
    %v1127 = vpop.f32.mrb[0].mxu0
    %1128 = vdwg.mxu0
    %v1129 = vmul.f32 %v930, %v1091
    %v1130 = vmul.f32 %v932, %v1096
    %v1131 = vmul.f32 %v934, %v1101
    %v1132 = vmul.f32 %v936, %v1106
    %v1133 = vmul.f32 %v938, %v1111
    %v1134 = vmul.f32 %v940, %v1116
    %v1135 = vmul.f32 %v942, %v1121
    %v1136 = vmul.f32 %v944, %v1126
    %v1137 = vld [vmem:[%s15] sm:$0xf]
    %v1139 = vsel %vm499, %v1129, 0
    %v1142 = vsel %vm499, %v1130, 0
    %v1145 = vsel %vm499, %v1131, 0
    %v1148 = vsel %vm499, %v1132, 0
    %v1151 = vsel %vm499, %v1133, 0
    %v1154 = vsel %vm499, %v1134, 0
    %v1157 = vsel %vm499, %v1135, 0
    %v1160 = vsel %vm499, %v1136, 0
    %v1163 = vsel %vm524, %v1137, 0
    %1165 = vmatprep.subr.mxu0 0.0
    %1166 = vmatpush1.msra.mxu0 %v1163
    %1167 = vmatprep.subr.mxu0 0.0
    %1168 = vmatpush1.msra.mxu0 0.0
    %1169 = vmatprep.subr.mxu0 0.0
    %1170 = vmatpush1.msra.mxu0 0.0
    %1171 = vmatprep.subr.mxu0 0.0
    %1172 = vmatpush1.msra.mxu0 0.0
    %1173 = vmatprep.subr.mxu0 0.0
    %1174 = vmatpush1.msra.mxu0 0.0
    %1175 = vmatprep.subr.mxu0 0.0
    %1176 = vmatpush1.msra.mxu0 0.0
    %1177 = vmatprep.subr.mxu0 0.0
    %1178 = vmatpush1.msra.mxu0 0.0
    %1179 = vmatprep.subr.mxu0 0.0
    %1180 = vmatpush1.msra.mxu0 0.0
    %1181 = vmatprep.subr.mxu0 0.0
    %1182 = vmatpush1.msra.mxu0 0.0
    %1183 = vmatprep.subr.mxu0 0.0
    %1184 = vmatpush1.msra.mxu0 0.0
    %1185 = vmatprep.subr.mxu0 0.0
    %1186 = vmatpush1.msra.mxu0 0.0
    %1187 = vmatprep.subr.mxu0 0.0
    %1188 = vmatpush1.msra.mxu0 0.0
    %1189 = vmatprep.subr.mxu0 0.0
    %1190 = vmatpush1.msra.mxu0 0.0
    %1191 = vmatprep.subr.mxu0 0.0
    %1192 = vmatpush1.msra.mxu0 0.0
    %1193 = vmatprep.subr.mxu0 0.0
    %1194 = vmatpush1.msra.mxu0 0.0
    %1195 = vmatprep.subr.mxu0 0.0
    %1196 = vmatpush1.msra.mxu0 0.0
    %1197 = vmatprep.subr.mxu0 0.0
    %1198 = vmatpush1.msra.mxu0 0.0
    %1199 = vmatprep.subr.mxu0 0.0
    %1200 = vmatpush1.msra.mxu0 0.0
    %1201 = vmatprep.subr.mxu0 0.0
    %1202 = vmatpush1.msra.mxu0 0.0
    %1203 = vmatprep.subr.mxu0 0.0
    %1204 = vmatpush1.msra.mxu0 0.0
    %1205 = vmatprep.subr.mxu0 0.0
    %1206 = vmatpush1.msra.mxu0 0.0
    %1207 = vmatprep.subr.mxu0 0.0
    %1208 = vmatpush1.msra.mxu0 0.0
    %1209 = vmatprep.subr.mxu0 0.0
    %1210 = vmatpush1.msra.mxu0 0.0
    %1211 = vmatprep.subr.mxu0 0.0
    %1212 = vmatpush1.msra.mxu0 0.0
    %1213 = vmatprep.subr.mxu0 0.0
    %1214 = vmatpush1.msra.mxu0 0.0
    %1215 = vmatprep.subr.mxu0 0.0
    %1216 = vmatpush1.msra.mxu0 0.0
    %1217 = vmatprep.subr.mxu0 0.0
    %1218 = vmatpush1.msra.mxu0 0.0
    %1219 = vmatprep.subr.mxu0 0.0
    %1220 = vmatpush1.msra.mxu0 0.0
    %1221 = vmatprep.subr.mxu0 0.0
    %1222 = vmatpush1.msra.mxu0 0.0
    %1223 = vmatprep.subr.mxu0 0.0
    %1224 = vmatpush1.msra.mxu0 0.0
    %1225 = vmatprep.subr.mxu0 0.0
    %1226 = vmatpush1.msra.mxu0 0.0
    %1227 = vmatprep.subr.mxu0 0.0
    %1228 = vmatpush1.msra.mxu0 0.0
    %1229 = vmatprep.mubr.f32.mxu0 0.0
    %1230 = vmatmul.mubr.f32.gmra.mrb[0].mxu0 %v1139
    %v1231 = vpop.f32.mrb[0].mxu0
    %v1232 = vadd.f32 0.0, %v1231
    %v1233 = vpop.f32.mrb[0].mxu0
    %1234 = vmatprep.mubr.f32.mxu0 0.0
    %1235 = vmatmul.mubr.f32.gmra.mrb[0].mxu0 %v1142
    %v1236 = vpop.f32.mrb[0].mxu0
    %v1237 = vadd.f32 0.0, %v1236
    %v1238 = vpop.f32.mrb[0].mxu0
    %1239 = vmatprep.mubr.f32.mxu0 0.0
    %1240 = vmatmul.mubr.f32.gmra.mrb[0].mxu0 %v1145
    %v1241 = vpop.f32.mrb[0].mxu0
    %v1242 = vadd.f32 0.0, %v1241
    %v1243 = vpop.f32.mrb[0].mxu0
    %1244 = vmatprep.mubr.f32.mxu0 0.0
    %1245 = vmatmul.mubr.f32.gmra.mrb[0].mxu0 %v1148
    %v1246 = vpop.f32.mrb[0].mxu0
    %v1247 = vadd.f32 0.0, %v1246
    %v1248 = vpop.f32.mrb[0].mxu0
    %1249 = vmatprep.mubr.f32.mxu0 0.0
    %1250 = vmatmul.mubr.f32.gmra.mrb[0].mxu0 %v1151
    %v1251 = vpop.f32.mrb[0].mxu0
    %v1252 = vadd.f32 0.0, %v1251
    %v1253 = vpop.f32.mrb[0].mxu0
    %1254 = vmatprep.mubr.f32.mxu0 0.0
    %1255 = vmatmul.mubr.f32.gmra.mrb[0].mxu0 %v1154
    %v1256 = vpop.f32.mrb[0].mxu0
    %v1257 = vadd.f32 0.0, %v1256
    %v1258 = vpop.f32.mrb[0].mxu0
    %1259 = vmatprep.mubr.f32.mxu0 0.0
    %1260 = vmatmul.mubr.f32.gmra.mrb[0].mxu0 %v1157
    %v1261 = vpop.f32.mrb[0].mxu0
    %v1262 = vadd.f32 0.0, %v1261
    %v1263 = vpop.f32.mrb[0].mxu0
    %1264 = vmatprep.mubr.f32.mxu0 0.0
    %1265 = vmatmul.mubr.f32.gmra.mrb[0].mxu0 %v1160
    %v1266 = vpop.f32.mrb[0].mxu0
    %v1267 = vadd.f32 0.0, %v1266
    %v1268 = vpop.f32.mrb[0].mxu0
    %1269 = vdwg.mxu0
    %1278 = vrot.lane.b32.xlu0 %v453, 96
    %v1279 = vpop.permute.xlu0 %1278
    %1280 = vrot.lane.b32.xlu0 %v458, 96
    %v1281 = vpop.permute.xlu0 %1280
    %1282 = vrot.lane.b32.xlu0 %v463, 96
    %v1283 = vpop.permute.xlu0 %1282
    %1284 = vrot.lane.b32.xlu0 %v468, 96
    %v1285 = vpop.permute.xlu0 %1284
    %1286 = vrot.lane.b32.xlu0 %v473, 96
    %v1287 = vpop.permute.xlu0 %1286
    %1288 = vrot.lane.b32.xlu0 %v478, 96
    %v1289 = vpop.permute.xlu0 %1288
    %1290 = vrot.lane.b32.xlu0 %v483, 96
    %v1291 = vpop.permute.xlu0 %1290
    %1292 = vrot.lane.b32.xlu0 %v488, 96
    %v1293 = vpop.permute.xlu0 %1292
    %v1302 = vmul.f32 %v1232, %v1279
    %v1303 = vmul.f32 %v1237, %v1281
    %v1304 = vmul.f32 %v1242, %v1283
    %v1305 = vmul.f32 %v1247, %v1285
    %v1306 = vmul.f32 %v1252, %v1287
    %v1307 = vmul.f32 %v1257, %v1289
    %v1308 = vmul.f32 %v1262, %v1291
    %v1309 = vmul.f32 %v1267, %v1293
    %1310 = vmatprep.subr.mxu0 0.0
    %1311 = vmatpush1.msra.mxu0 %v1302
    %1312 = vmatprep.subr.mxu0 0.0
    %1313 = vmatpush1.msra.mxu0 %v1303
    %1314 = vmatprep.subr.mxu0 0.0
    %1315 = vmatpush1.msra.mxu0 %v1304
    %1316 = vmatprep.subr.mxu0 0.0
    %1317 = vmatpush1.msra.mxu0 %v1305
    %1318 = vmatprep.subr.mxu0 0.0
    %1319 = vmatpush1.msra.mxu0 %v1306
    %1320 = vmatprep.subr.mxu0 0.0
    %1321 = vmatpush1.msra.mxu0 %v1307
    %1322 = vmatprep.subr.mxu0 0.0
    %1323 = vmatpush1.msra.mxu0 %v1308
    %1324 = vmatprep.subr.mxu0 0.0
    %1325 = vmatpush1.msra.mxu0 %v1309
    %1326 = vmatprep.subr.mxu0 0.0
    %1327 = vmatpush1.msra.mxu0 0.0
    %1328 = vmatprep.subr.mxu0 0.0
    %1329 = vmatpush1.msra.mxu0 0.0
    %1330 = vmatprep.subr.mxu0 0.0
    %1331 = vmatpush1.msra.mxu0 0.0
    %1332 = vmatprep.subr.mxu0 0.0
    %1333 = vmatpush1.msra.mxu0 0.0
    %1334 = vmatprep.subr.mxu0 0.0
    %1335 = vmatpush1.msra.mxu0 0.0
    %1336 = vmatprep.subr.mxu0 0.0
    %1337 = vmatpush1.msra.mxu0 0.0
    %1338 = vmatprep.subr.mxu0 0.0
    %1339 = vmatpush1.msra.mxu0 0.0
    %1340 = vmatprep.subr.mxu0 0.0
    %1341 = vmatpush1.msra.mxu0 0.0
    %1342 = vmatprep.subr.mxu0 0.0
    %1343 = vmatpush1.msra.mxu0 0.0
    %1344 = vmatprep.subr.mxu0 0.0
    %1345 = vmatpush1.msra.mxu0 0.0
    %1346 = vmatprep.subr.mxu0 0.0
    %1347 = vmatpush1.msra.mxu0 0.0
    %1348 = vmatprep.subr.mxu0 0.0
    %1349 = vmatpush1.msra.mxu0 0.0
    %1350 = vmatprep.subr.mxu0 0.0
    %1351 = vmatpush1.msra.mxu0 0.0
    %1352 = vmatprep.subr.mxu0 0.0
    %1353 = vmatpush1.msra.mxu0 0.0
    %1354 = vmatprep.subr.mxu0 0.0
    %1355 = vmatpush1.msra.mxu0 0.0
    %1356 = vmatprep.subr.mxu0 0.0
    %1357 = vmatpush1.msra.mxu0 0.0
    %1358 = vmatprep.subr.mxu0 0.0
    %1359 = vmatpush1.msra.mxu0 0.0
    %1360 = vmatprep.subr.mxu0 0.0
    %1361 = vmatpush1.msra.mxu0 0.0
    %1362 = vmatprep.subr.mxu0 0.0
    %1363 = vmatpush1.msra.mxu0 0.0
    %1364 = vmatprep.subr.mxu0 0.0
    %1365 = vmatpush1.msra.mxu0 0.0
    %1366 = vmatprep.subr.mxu0 0.0
    %1367 = vmatpush1.msra.mxu0 0.0
    %1368 = vmatprep.subr.mxu0 0.0
    %1369 = vmatpush1.msra.mxu0 0.0
    %1370 = vmatprep.subr.mxu0 0.0
    %1371 = vmatpush1.msra.mxu0 0.0
    %1372 = vmatprep.subr.mxu0 0.0
    %1373 = vmatpush1.msra.mxu0 0.0
    %1374 = vmatprep.mubr.f32.mxu0 0.0
    %1375 = vmatmul.mubr.f32.gmra.mrb[0].mxu0 %v948
    %v1376 = vpop.f32.mrb[0].mxu0
    %v1377 = vadd.f32 0.0, %v1376
    %v1378 = vpop.f32.mrb[0].mxu0
    %1379 = vdwg.mxu0
    %v1380 = vld [vmem:[%s9] sm:$0xff]
    %v1381 = vld [vmem:[%s9 + $0x8] sm:$0xff]
    %v1382 = vld [vmem:[%s9 + $0x10] sm:$0xff]
    %v1383 = vld [vmem:[%s9 + $0x18] sm:$0xff]
    %v1384 = vld [vmem:[%s10] sm:$0x1]
    %v1386 = vlaneseq
    %v1387 = vshrl.u32 %v1386, 7
    %v1388 = vsub.s32 0, %v1387
    %v1389 = vrot.slane %v1384, %v1388
    %v1392 = vsel %vm79, %v1377, 0
    %1394 = vmatprep.subr.mxu0 0.0
    %1395 = vmatpush1.msra.mxu0 %v1380
    %1396 = vmatprep.subr.mxu0 0.0
    %1397 = vmatpush1.msra.mxu0 %v1381
    %1398 = vmatprep.subr.mxu0 0.0
    %1399 = vmatpush1.msra.mxu0 %v1382
    %1400 = vmatprep.subr.mxu0 0.0
    %1401 = vmatpush1.msra.mxu0 %v1383
    %1402 = vmatprep.subr.mxu0 0.0
    %1403 = vmatpush1.msra.mxu0 0.0
    %1404 = vmatprep.subr.mxu0 0.0
    %1405 = vmatpush1.msra.mxu0 0.0
    %1406 = vmatprep.subr.mxu0 0.0
    %1407 = vmatpush1.msra.mxu0 0.0
    %1408 = vmatprep.subr.mxu0 0.0
    %1409 = vmatpush1.msra.mxu0 0.0
    %1410 = vmatprep.subr.mxu0 0.0
    %1411 = vmatpush1.msra.mxu0 0.0
    %1412 = vmatprep.subr.mxu0 0.0
    %1413 = vmatpush1.msra.mxu0 0.0
    %1414 = vmatprep.subr.mxu0 0.0
    %1415 = vmatpush1.msra.mxu0 0.0
    %1416 = vmatprep.subr.mxu0 0.0
    %1417 = vmatpush1.msra.mxu0 0.0
    %1418 = vmatprep.subr.mxu0 0.0
    %1419 = vmatpush1.msra.mxu0 0.0
    %1420 = vmatprep.subr.mxu0 0.0
    %1421 = vmatpush1.msra.mxu0 0.0
    %1422 = vmatprep.subr.mxu0 0.0
    %1423 = vmatpush1.msra.mxu0 0.0
    %1424 = vmatprep.subr.mxu0 0.0
    %1425 = vmatpush1.msra.mxu0 0.0
    %1426 = vmatprep.subr.mxu0 0.0
    %1427 = vmatpush1.msra.mxu0 0.0
    %1428 = vmatprep.subr.mxu0 0.0
    %1429 = vmatpush1.msra.mxu0 0.0
    %1430 = vmatprep.subr.mxu0 0.0
    %1431 = vmatpush1.msra.mxu0 0.0
    %1432 = vmatprep.subr.mxu0 0.0
    %1433 = vmatpush1.msra.mxu0 0.0
    %1434 = vmatprep.subr.mxu0 0.0
    %1435 = vmatpush1.msra.mxu0 0.0
    %1436 = vmatprep.subr.mxu0 0.0
    %1437 = vmatpush1.msra.mxu0 0.0
    %1438 = vmatprep.subr.mxu0 0.0
    %1439 = vmatpush1.msra.mxu0 0.0
    %1440 = vmatprep.subr.mxu0 0.0
    %1441 = vmatpush1.msra.mxu0 0.0
    %1442 = vmatprep.subr.mxu0 0.0
    %1443 = vmatpush1.msra.mxu0 0.0
    %1444 = vmatprep.subr.mxu0 0.0
    %1445 = vmatpush1.msra.mxu0 0.0
    %1446 = vmatprep.subr.mxu0 0.0
    %1447 = vmatpush1.msra.mxu0 0.0
    %1448 = vmatprep.subr.mxu0 0.0
    %1449 = vmatpush1.msra.mxu0 0.0
    %1450 = vmatprep.subr.mxu0 0.0
    %1451 = vmatpush1.msra.mxu0 0.0
    %1452 = vmatprep.subr.mxu0 0.0
    %1453 = vmatpush1.msra.mxu0 0.0
    %1454 = vmatprep.subr.mxu0 0.0
    %1455 = vmatpush1.msra.mxu0 0.0
    %1456 = vmatprep.subr.mxu0 0.0
    %1457 = vmatpush1.msra.mxu0 0.0
    %1458 = vmatprep.mubr.f32.mxu0 0.0
    %1459 = vmatmul.mubr.f32.gmra.mrb[0].mxu0 %v1392
    %v1460 = vpop.f32.mrb[0].mxu0
    %v1461 = vadd.f32 %v1389, %v1460
    %v1462 = vpop.f32.mrb[0].mxu0
    %1463 = vdwg.mxu0
    %v1464 = vld [vmem:[%s11] sm:$0xff]
    %v1465 = vld [vmem:[%s11 + $0x8] sm:$0xff]
    %v1466 = vld [vmem:[%s11 + $0x10] sm:$0xff]
    %v1467 = vld [vmem:[%s11 + $0x18] sm:$0xff]
    %v1468 = vld [vmem:[%s12] sm:$0xff]
    %v1469 = vld [vmem:[%s12 + $0x8] sm:$0xff]
    %v1470 = vld [vmem:[%s12 + $0x10] sm:$0xff]
    %v1471 = vld [vmem:[%s12 + $0x18] sm:$0xff]
    %v1473 = vsel %vm79, %v1461, 0
    %1475 = vmatprep.subr.mxu0 0.0
    %1476 = vmatpush1.msra.mxu0 %v1468
    %1477 = vmatprep.subr.mxu0 0.0
    %1478 = vmatpush1.msra.mxu0 %v1469
    %1479 = vmatprep.subr.mxu0 0.0
    %1480 = vmatpush1.msra.mxu0 %v1470
    %1481 = vmatprep.subr.mxu0 0.0
    %1482 = vmatpush1.msra.mxu0 %v1471
    %1483 = vmatprep.subr.mxu0 0.0
    %1484 = vmatpush1.msra.mxu0 0.0
    %1485 = vmatprep.subr.mxu0 0.0
    %1486 = vmatpush1.msra.mxu0 0.0
    %1487 = vmatprep.subr.mxu0 0.0
    %1488 = vmatpush1.msra.mxu0 0.0
    %1489 = vmatprep.subr.mxu0 0.0
    %1490 = vmatpush1.msra.mxu0 0.0
    %1491 = vmatprep.subr.mxu0 0.0
    %1492 = vmatpush1.msra.mxu0 0.0
    %1493 = vmatprep.subr.mxu0 0.0
    %1494 = vmatpush1.msra.mxu0 0.0
    %1495 = vmatprep.subr.mxu0 0.0
    %1496 = vmatpush1.msra.mxu0 0.0
    %1497 = vmatprep.subr.mxu0 0.0
    %1498 = vmatpush1.msra.mxu0 0.0
    %1499 = vmatprep.subr.mxu0 0.0
    %1500 = vmatpush1.msra.mxu0 0.0
    %1501 = vmatprep.subr.mxu0 0.0
    %1502 = vmatpush1.msra.mxu0 0.0
    %1503 = vmatprep.subr.mxu0 0.0
    %1504 = vmatpush1.msra.mxu0 0.0
    %1505 = vmatprep.subr.mxu0 0.0
    %1506 = vmatpush1.msra.mxu0 0.0
    %1507 = vmatprep.subr.mxu0 0.0
    %1508 = vmatpush1.msra.mxu0 0.0
    %1509 = vmatprep.subr.mxu0 0.0
    %1510 = vmatpush1.msra.mxu0 0.0
    %1511 = vmatprep.subr.mxu0 0.0
    %1512 = vmatpush1.msra.mxu0 0.0
    %1513 = vmatprep.subr.mxu0 0.0
    %1514 = vmatpush1.msra.mxu0 0.0
    %1515 = vmatprep.subr.mxu0 0.0
    %1516 = vmatpush1.msra.mxu0 0.0
    %1517 = vmatprep.subr.mxu0 0.0
    %1518 = vmatpush1.msra.mxu0 0.0
    %1519 = vmatprep.subr.mxu0 0.0
    %1520 = vmatpush1.msra.mxu0 0.0
    %1521 = vmatprep.subr.mxu0 0.0
    %1522 = vmatpush1.msra.mxu0 0.0
    %1523 = vmatprep.subr.mxu0 0.0
    %1524 = vmatpush1.msra.mxu0 0.0
    %1525 = vmatprep.subr.mxu0 0.0
    %1526 = vmatpush1.msra.mxu0 0.0
    %1527 = vmatprep.subr.mxu0 0.0
    %1528 = vmatpush1.msra.mxu0 0.0
    %1529 = vmatprep.subr.mxu0 0.0
    %1530 = vmatpush1.msra.mxu0 0.0
    %1531 = vmatprep.subr.mxu0 0.0
    %1532 = vmatpush1.msra.mxu0 0.0
    %1533 = vmatprep.subr.mxu0 0.0
    %1534 = vmatpush1.msra.mxu0 0.0
    %1535 = vmatprep.subr.mxu0 0.0
    %1536 = vmatpush1.msra.mxu0 0.0
    %1537 = vmatprep.subr.mxu0 0.0
    %1538 = vmatpush1.msra.mxu0 0.0
    %1539 = vmatprep.mubr.f32.mxu0 0.0
    %1540 = vmatmul.mubr.f32.gmra.mrb[0].mxu0 %v1473
    %v1541 = vpop.f32.mrb[0].mxu0
    %v1542 = vadd.f32 0.0, %v1541
    %v1543 = vpop.f32.mrb[0].mxu0
    %1544 = vdwg.mxu0
    %v1546 = vsel %vm79, %v250, 0
    %1548 = vmatprep.subr.mxu0 0.0
    %1549 = vmatpush1.msra.mxu0 %v1464
    %1550 = vmatprep.subr.mxu0 0.0
    %1551 = vmatpush1.msra.mxu0 %v1465
    %1552 = vmatprep.subr.mxu0 0.0
    %1553 = vmatpush1.msra.mxu0 %v1466
    %1554 = vmatprep.subr.mxu0 0.0
    %1555 = vmatpush1.msra.mxu0 %v1467
    %1556 = vmatprep.subr.mxu0 0.0
    %1557 = vmatpush1.msra.mxu0 0.0
    %1558 = vmatprep.subr.mxu0 0.0
    %1559 = vmatpush1.msra.mxu0 0.0
    %1560 = vmatprep.subr.mxu0 0.0
    %1561 = vmatpush1.msra.mxu0 0.0
    %1562 = vmatprep.subr.mxu0 0.0
    %1563 = vmatpush1.msra.mxu0 0.0
    %1564 = vmatprep.subr.mxu0 0.0
    %1565 = vmatpush1.msra.mxu0 0.0
    %1566 = vmatprep.subr.mxu0 0.0
    %1567 = vmatpush1.msra.mxu0 0.0
    %1568 = vmatprep.subr.mxu0 0.0
    %1569 = vmatpush1.msra.mxu0 0.0
    %1570 = vmatprep.subr.mxu0 0.0
    %1571 = vmatpush1.msra.mxu0 0.0
    %1572 = vmatprep.subr.mxu0 0.0
    %1573 = vmatpush1.msra.mxu0 0.0
    %1574 = vmatprep.subr.mxu0 0.0
    %1575 = vmatpush1.msra.mxu0 0.0
    %1576 = vmatprep.subr.mxu0 0.0
    %1577 = vmatpush1.msra.mxu0 0.0
    %1578 = vmatprep.subr.mxu0 0.0
    %1579 = vmatpush1.msra.mxu0 0.0
    %1580 = vmatprep.subr.mxu0 0.0
    %1581 = vmatpush1.msra.mxu0 0.0
    %1582 = vmatprep.subr.mxu0 0.0
    %1583 = vmatpush1.msra.mxu0 0.0
    %1584 = vmatprep.subr.mxu0 0.0
    %1585 = vmatpush1.msra.mxu0 0.0
    %1586 = vmatprep.subr.mxu0 0.0
    %1587 = vmatpush1.msra.mxu0 0.0
    %1588 = vmatprep.subr.mxu0 0.0
    %1589 = vmatpush1.msra.mxu0 0.0
    %1590 = vmatprep.subr.mxu0 0.0
    %1591 = vmatpush1.msra.mxu0 0.0
    %1592 = vmatprep.subr.mxu0 0.0
    %1593 = vmatpush1.msra.mxu0 0.0
    %1594 = vmatprep.subr.mxu0 0.0
    %1595 = vmatpush1.msra.mxu0 0.0
    %1596 = vmatprep.subr.mxu0 0.0
    %1597 = vmatpush1.msra.mxu0 0.0
    %1598 = vmatprep.subr.mxu0 0.0
    %1599 = vmatpush1.msra.mxu0 0.0
    %1600 = vmatprep.subr.mxu0 0.0
    %1601 = vmatpush1.msra.mxu0 0.0
    %1602 = vmatprep.subr.mxu0 0.0
    %1603 = vmatpush1.msra.mxu0 0.0
    %1604 = vmatprep.subr.mxu0 0.0
    %1605 = vmatpush1.msra.mxu0 0.0
    %1606 = vmatprep.subr.mxu0 0.0
    %1607 = vmatpush1.msra.mxu0 0.0
    %1608 = vmatprep.subr.mxu0 0.0
    %1609 = vmatpush1.msra.mxu0 0.0
    %1610 = vmatprep.subr.mxu0 0.0
    %1611 = vmatpush1.msra.mxu0 0.0
    %1612 = vmatprep.mubr.f32.mxu0 0.0
    %1613 = vmatmul.mubr.f32.gmra.mrb[0].mxu0 %v1546
    %v1614 = vpop.f32.mrb[0].mxu0
    %v1615 = vadd.f32 %v1542, %v1614
    %v1616 = vpop.f32.mrb[0].mxu0
    %1617 = vdwg.mxu0
    %v1618 = vld [vmem:[%s13] sm:$0x1]
    %v1620 = vlaneseq
    %v1621 = vshrl.u32 %v1620, 7
    %v1622 = vsub.s32 0, %v1621
    %v1623 = vrot.slane %v1618, %v1622
    %v1625 = vadd.f32 %v1615, %v1623
    %vm1626 = vcmask 257024
    %1627 = vst.msk [vmem:[#allocation2] sm:$0xf] %vm1626, %v1625
    // Predicated region
    $region74: #{tpu_custom_call.1} parent=1 // pred_check
      _
    $region75: #{tpu_custom_call.1} parent=1 // pred_check_branch
      %1629 = sbr.rel (0) target = $region77
    $region76: #{tpu_custom_call.1} parent=1 // pred_region
      %s1631 = ssub.s32 64, 64
      %1632 = vsyncadd [#allocation3], %s1631
      %s1634 = sshll.u32 [#allocation2], 4
      %s1635 = int_to_ptr.vmem [resolvable:$true] %s1634
      %1637 = dma.vmem_to_hbm [thread:$0]  %s1635, 64, %s18, [#allocation3]
    $region77: #{tpu_custom_call.1} parent=1 // pred_fallthru
      _
    // Predicated region
    $region78: #{tpu_custom_call.1} parent=1 // pred_check
      _
    $region79: #{tpu_custom_call.1} parent=1 // pred_check_branch
      %1639 = sbr.rel (0) target = $region81
    $region80: #{tpu_custom_call.1} parent=1 // pred_region
      %1640 = dma.done [#allocation3], 64
    $region81: #{tpu_custom_call.1} parent=1 // pred_fallthru
      _
    %1641 = vsyncpa [#allocation3], 1

</llo_original>
